<compile_context>
chip_gen: v5e
topology: v5e:2x2
jax: 0.10.0
libtpu: 0.0.40
codegen_flags: <defaults>
</compile_context>

<pallas_src>
import functools
import math

import jax
import jax.numpy as jnp
from jax import lax
from jax.experimental import pallas as pl
from jax.experimental.pallas import tpu as pltpu

LANE = 128  # TPU lane width; narrow feature/action dims are zero-padded to this.


def _round_up(n, m):
    return (n + m - 1) // m * m


# ---------------------------------------------------------------------------
# Pass 1 kernel: trunk MLP (5x Linear+ReLU) + fused value/advantage head.
# Batch-tiled; weights VMEM-resident; bf16 MXU inputs, f32 accumulate/elementwise.
# ---------------------------------------------------------------------------
def _trunk_head_kernel(x_ref,
                       w0, b0, w1, b1, w2, b2, w3, b3, w4, b4,
                       wh, bh,
                       head_ref):
    h = x_ref[...]                                                    # bf16 (TB, 128)
    for w_r, b_r in ((w0, b0), (w1, b1), (w2, b2), (w3, b3), (w4, b4)):
        z = jnp.dot(h, w_r[...], preferred_element_type=jnp.float32) + b_r[...]
        h = jnp.maximum(z, 0.0).astype(jnp.bfloat16)                  # ReLU in f32, bf16 to MXU
    # Fused heads: one (128,128)-padded matmul; col 0 = state value, 1..A = advantage.
    head_ref[...] = jnp.dot(h, wh[...], preferred_element_type=jnp.float32) + bh[...]


# ---------------------------------------------------------------------------
# Pass 2 kernel: global advantage mean, dueling combine, per-action scale,
# masked softmax over the A valid action columns, lane-dense (B, 128) store.
# ---------------------------------------------------------------------------
def _combine_softmax_kernel(head_ref, scale_ref, out_ref, *, num_actions):
    head = head_ref[...]                                              # (B, 128) f32
    b, c = head.shape
    col = lax.broadcasted_iota(jnp.int32, (b, c), 1)
    adv_mask = (col >= 1) & (col <= num_actions)                      # advantage cols 1..A

    state_val = head[:, 0:1]                                          # (B, 1)
    # torch advantage.mean(): scalar mean over ALL (B, A) elements.
    adv_mean = jnp.sum(jnp.where(adv_mask, head, 0.0)) * (1.0 / (b * num_actions))

    combined = (head + (state_val - adv_mean)) * scale_ref[...]       # scale padded to 128
    masked = jnp.where(adv_mask, combined, -jnp.inf)
    m = jnp.max(masked, axis=-1, keepdims=True)
    e = jnp.exp(masked - m)                                           # padded cols -> 0
    out_ref[...] = e / jnp.sum(e, axis=-1, keepdims=True)


# ---------------------------------------------------------------------------
# Parameter construction (mimics nn.Linear init) and wrapper-side preparation.
# ---------------------------------------------------------------------------
def _linear_params(key, fan_in, fan_out):
    kw, kb = jax.random.split(key)
    bound = 1.0 / math.sqrt(fan_in)
    w = jax.random.uniform(kw, (fan_in, fan_out), jnp.float32, -bound, bound)
    b = jax.random.uniform(kb, (1, fan_out), jnp.float32, -bound, bound)
    return w, b


def init_params(key, num_inputs, num_outputs, layers_per_side=3, base_nodes=64):
    dims = []
    cur = base_nodes
    inp = num_inputs
    for _ in range(layers_per_side):
        dims.append((inp, cur))
        inp = cur
        cur *= 2
    cur //= 2
    for _ in range(layers_per_side - 1):
        dims.append((cur, cur // 2))
        cur //= 2
    keys = jax.random.split(key, len(dims) + 2)
    trunk = [_linear_params(keys[i], fi, fo) for i, (fi, fo) in enumerate(dims)]
    wv, bv = _linear_params(keys[-2], cur, 1)
    wa, ba = _linear_params(keys[-1], cur, num_outputs)
    switch_scalar = 0.5
    scale = jnp.array([[1, 1, 1, 1,
                        switch_scalar, switch_scalar, switch_scalar,
                        switch_scalar, switch_scalar]], dtype=jnp.float32)
    assert scale.shape[1] == num_outputs
    return trunk, (wv, bv), (wa, ba), scale


def prepare_params(trunk, val_head, adv_head, scale):
    """Wrapper-side prep: fuse the two heads into one matmul, zero-pad narrow
    dims to 128 lanes (exact identity under the ReLU MLP), cast matmul weights
    to bf16 (MXU inputs); biases stay f32."""
    def pad_w(w):
        fi, fo = w.shape
        out = jnp.zeros((_round_up(fi, LANE), _round_up(fo, LANE)), jnp.float32)
        return out.at[:fi, :fo].set(w).astype(jnp.bfloat16)

    def pad_b(b):
        fo = b.shape[1]
        return jnp.zeros((1, _round_up(fo, LANE)), jnp.float32).at[:, :fo].set(b)

    packed = []
    for w, b in trunk:
        packed.append(pad_w(w))
        packed.append(pad_b(b))
    wv, bv = val_head
    wa, ba = adv_head
    wh = jnp.concatenate([wv, wa], axis=1)      # (64, 1+A) fused head weight
    bh = jnp.concatenate([bv, ba], axis=1)      # (1, 1+A)
    packed.append(pad_w(wh))
    packed.append(pad_b(bh))
    num_actions = scale.shape[1]
    scale_pad = jnp.zeros((1, LANE), jnp.float32).at[:, 1:1 + num_actions].set(scale)
    return tuple(packed), scale_pad, num_actions


# ---------------------------------------------------------------------------
# Forward wrapper: two pallas_calls (batch-tiled trunk+heads, then combine+softmax).
# ---------------------------------------------------------------------------
def dueling_pokenet_forward(x, packed_params, scale_pad, num_actions, *, tile_b=128):
    b, f = x.shape
    f_pad = _round_up(f, LANE)
    b_pad = _round_up(b, tile_b)

    # Zero-pad features to full lanes and batch to a multiple of the tile; bf16 MXU input.
    x_pad = jnp.zeros((b_pad, f_pad), jnp.bfloat16).at[:b, :f].set(x.astype(jnp.bfloat16))

    head_w = packed_params[-2].shape[1]         # 128 (padded 1+A)
    n_tiles = b_pad // tile_b

    weight_specs = [pl.BlockSpec(p.shape, lambda i: (0, 0)) for p in packed_params]

    head_pad = pl.pallas_call(
        _trunk_head_kernel,
        out_shape=jax.ShapeDtypeStruct((b_pad, head_w), jnp.float32),
        grid=(n_tiles,),
        in_specs=[pl.BlockSpec((tile_b, f_pad), lambda i: (i, 0))] + weight_specs,
        out_specs=pl.BlockSpec((tile_b, head_w), lambda i: (i, 0)),
        compiler_params=pltpu.CompilerParams(dimension_semantics=("parallel",)),
    )(x_pad, *packed_params)

    # Drop padded batch rows before the global-mean pass (they must not pollute the mean).
    head = head_pad[:b]

    # Pass 2: tiny (B, 128) slab -> whole-array VMEM residency is fine for realistic B
    # (512 B/row). For extremely large batches this pass could also be tiled with the
    # mean precomputed via scalar prefetch.
    vmem = pl.BlockSpec(memory_space=pltpu.MemorySpace.VMEM)
    out_pad = pl.pallas_call(
        functools.partial(_combine_softmax_kernel, num_actions=num_actions),
        out_shape=jax.ShapeDtypeStruct((b, head_w), jnp.float32),
        in_specs=[vmem, vmem],
        out_specs=vmem,
    )(head, scale_pad)

    return out_pad[:, 1:1 + num_actions]


# ---------------------------------------------------------------------------
# Pure-JAX reference mirroring the kernel numerics (bf16 MXU inputs, f32 accum,
# f32 elementwise) for a tight correctness check.
# ---------------------------------------------------------------------------
def reference_forward(x, trunk, val_head, adv_head, scale):
    h = x
    for w, b in trunk:
        z = jnp.dot(h.astype(jnp.bfloat16), w.astype(jnp.bfloat16),
                    preferred_element_type=jnp.float32) + b
        h = jnp.maximum(z, 0.0)
    wv, bv = val_head
    wa, ba = adv_head
    hb = h.astype(jnp.bfloat16)
    state_val = jnp.dot(hb, wv.astype(jnp.bfloat16), preferred_element_type=jnp.float32) + bv
    adv = jnp.dot(hb, wa.astype(jnp.bfloat16), preferred_element_type=jnp.float32) + ba
    adv = adv + (state_val - jnp.mean(adv))
    adv = adv * scale
    return jax.nn.softmax(adv, axis=-1)


if __name__ == "__main__":
    NUM_INPUTS = 32
    NUM_OUTPUTS = 9    # matches the 9-element scale_switches (4 moves + 5 switches)
    BATCH = 200        # deliberately NOT a multiple of the 128-row tile (exercises padding)

    key = jax.random.PRNGKey(0)
    kx, kp = jax.random.split(key)
    x = jax.random.normal(kx, (BATCH, NUM_INPUTS), jnp.float32)

    trunk, val_head, adv_head, scale = init_params(kp, NUM_INPUTS, NUM_OUTPUTS)
    packed, scale_pad, num_actions = prepare_params(trunk, val_head, adv_head, scale)

    out = dueling_pokenet_forward(x, packed, scale_pad, num_actions, tile_b=128)
    out = jax.block_until_ready(out)

    ref = reference_forward(x, trunk, val_head, adv_head, scale)
    assert out.shape == (BATCH, NUM_OUTPUTS)
    assert jnp.allclose(out, ref, atol=1e-4, rtol=1e-4), "mismatch vs JAX reference"
    assert jnp.allclose(jnp.sum(out, axis=-1), 1.0, atol=1e-5), "softmax rows must sum to 1"

    print("KERNEL_OK")
</pallas_src>

<mosaic_0001>
module attributes {stable_mosaic.version = 11 : i64} {
  func.func @_trunk_head_kernel(%arg0: i32, %arg1: memref<128x128xbf16, #tpu.memory_space<vmem>>, %arg2: memref<128x128xbf16, #tpu.memory_space<vmem>>, %arg3: memref<1x128xf32, #tpu.memory_space<vmem>>, %arg4: memref<128x128xbf16, #tpu.memory_space<vmem>>, %arg5: memref<1x128xf32, #tpu.memory_space<vmem>>, %arg6: memref<128x256xbf16, #tpu.memory_space<vmem>>, %arg7: memref<1x256xf32, #tpu.memory_space<vmem>>, %arg8: memref<256x128xbf16, #tpu.memory_space<vmem>>, %arg9: memref<1x128xf32, #tpu.memory_space<vmem>>, %arg10: memref<128x128xbf16, #tpu.memory_space<vmem>>, %arg11: memref<1x128xf32, #tpu.memory_space<vmem>>, %arg12: memref<128x128xbf16, #tpu.memory_space<vmem>>, %arg13: memref<1x128xf32, #tpu.memory_space<vmem>>, %arg14: memref<128x128xf32, #tpu.memory_space<vmem>>) attributes {dimension_semantics = [#tpu.dimension_semantics<parallel>], iteration_bounds = array<i64: 2>, scalar_prefetch = 0 : i64, scratch_operands = 0 : i64, tpu.core_type = #tpu.core_type<tc>, window_params = [{transform_indices = @transform_0, window_bounds = array<i64: 128, 128>}, {pipeline_mode = #tpu.pipeline_mode<synchronous>, transform_indices = @transform_1, window_bounds = array<i64: 128, 128>}, {pipeline_mode = #tpu.pipeline_mode<synchronous>, transform_indices = @transform_2, window_bounds = array<i64: 1, 128>}, {pipeline_mode = #tpu.pipeline_mode<synchronous>, transform_indices = @transform_3, window_bounds = array<i64: 128, 128>}, {pipeline_mode = #tpu.pipeline_mode<synchronous>, transform_indices = @transform_4, window_bounds = array<i64: 1, 128>}, {pipeline_mode = #tpu.pipeline_mode<synchronous>, transform_indices = @transform_5, window_bounds = array<i64: 128, 256>}, {pipeline_mode = #tpu.pipeline_mode<synchronous>, transform_indices = @transform_6, window_bounds = array<i64: 1, 256>}, {pipeline_mode = #tpu.pipeline_mode<synchronous>, transform_indices = @transform_7, window_bounds = array<i64: 256, 128>}, {pipeline_mode = #tpu.pipeline_mode<synchronous>, transform_indices = @transform_8, window_bounds = array<i64: 1, 128>}, {pipeline_mode = #tpu.pipeline_mode<synchronous>, transform_indices = @transform_9, window_bounds = array<i64: 128, 128>}, {pipeline_mode = #tpu.pipeline_mode<synchronous>, transform_indices = @transform_10, window_bounds = array<i64: 1, 128>}, {pipeline_mode = #tpu.pipeline_mode<synchronous>, transform_indices = @transform_11, window_bounds = array<i64: 128, 128>}, {pipeline_mode = #tpu.pipeline_mode<synchronous>, transform_indices = @transform_12, window_bounds = array<i64: 1, 128>}, {transform_indices = @transform_13, window_bounds = array<i64: 128, 128>}]} {
    %c0 = arith.constant 0 : index
    %c0_0 = arith.constant 0 : index
    %0 = vector.load %arg1[%c0, %c0_0] : memref<128x128xbf16, #tpu.memory_space<vmem>>, vector<128x128xbf16>
    %c0_1 = arith.constant 0 : index
    %c0_2 = arith.constant 0 : index
    %1 = vector.load %arg2[%c0_1, %c0_2] : memref<128x128xbf16, #tpu.memory_space<vmem>>, vector<128x128xbf16>
    %cst = arith.constant dense<0.000000e+00> : vector<128x128xf32>
    %2 = tpu.matmul %0, %1, %cst {dimension_numbers = #tpu.dot_dimension_numbers<[1], [0], [0], [1], [0, 0, 1, 1], [], []>} : vector<128x128xbf16>, vector<128x128xbf16>, vector<128x128xf32> -> vector<128x128xf32>
    %c0_3 = arith.constant 0 : index
    %c0_4 = arith.constant 0 : index
    %3 = vector.load %arg3[%c0_3, %c0_4] : memref<1x128xf32, #tpu.memory_space<vmem>>, vector<1x128xf32>
    %4 = vector.broadcast %3 : vector<1x128xf32> to vector<128x128xf32>
    %5 = arith.addf %2, %4 : vector<128x128xf32>
    %cst_5 = arith.constant 0.000000e+00 : f32
    %6 = vector.broadcast %cst_5 : f32 to vector<128x128xf32>
    %7 = arith.maximumf %5, %6 : vector<128x128xf32>
    %8 = arith.truncf %7 : vector<128x128xf32> to vector<128x128xbf16>
    %c0_6 = arith.constant 0 : index
    %c0_7 = arith.constant 0 : index
    %9 = vector.load %arg4[%c0_6, %c0_7] : memref<128x128xbf16, #tpu.memory_space<vmem>>, vector<128x128xbf16>
    %cst_8 = arith.constant dense<0.000000e+00> : vector<128x128xf32>
    %10 = tpu.matmul %8, %9, %cst_8 {dimension_numbers = #tpu.dot_dimension_numbers<[1], [0], [0], [1], [0, 0, 1, 1], [], []>} : vector<128x128xbf16>, vector<128x128xbf16>, vector<128x128xf32> -> vector<128x128xf32>
    %c0_9 = arith.constant 0 : index
    %c0_10 = arith.constant 0 : index
    %11 = vector.load %arg5[%c0_9, %c0_10] : memref<1x128xf32, #tpu.memory_space<vmem>>, vector<1x128xf32>
    %12 = vector.broadcast %11 : vector<1x128xf32> to vector<128x128xf32>
    %13 = arith.addf %10, %12 : vector<128x128xf32>
    %cst_11 = arith.constant 0.000000e+00 : f32
    %14 = vector.broadcast %cst_11 : f32 to vector<128x128xf32>
    %15 = arith.maximumf %13, %14 : vector<128x128xf32>
    %16 = arith.truncf %15 : vector<128x128xf32> to vector<128x128xbf16>
    %c0_12 = arith.constant 0 : index
    %c0_13 = arith.constant 0 : index
    %17 = vector.load %arg6[%c0_12, %c0_13] : memref<128x256xbf16, #tpu.memory_space<vmem>>, vector<128x256xbf16>
    %cst_14 = arith.constant dense<0.000000e+00> : vector<128x256xf32>
    %18 = tpu.matmul %16, %17, %cst_14 {dimension_numbers = #tpu.dot_dimension_numbers<[1], [0], [0], [1], [0, 0, 1, 1], [], []>} : vector<128x128xbf16>, vector<128x256xbf16>, vector<128x256xf32> -> vector<128x256xf32>
    %c0_15 = arith.constant 0 : index
    %c0_16 = arith.constant 0 : index
    %19 = vector.load %arg7[%c0_15, %c0_16] : memref<1x256xf32, #tpu.memory_space<vmem>>, vector<1x256xf32>
    %20 = vector.broadcast %19 : vector<1x256xf32> to vector<128x256xf32>
    %21 = arith.addf %18, %20 : vector<128x256xf32>
    %cst_17 = arith.constant 0.000000e+00 : f32
    %22 = vector.broadcast %cst_17 : f32 to vector<128x256xf32>
    %23 = arith.maximumf %21, %22 : vector<128x256xf32>
    %24 = arith.truncf %23 : vector<128x256xf32> to vector<128x256xbf16>
    %c0_18 = arith.constant 0 : index
    %c0_19 = arith.constant 0 : index
    %25 = vector.load %arg8[%c0_18, %c0_19] : memref<256x128xbf16, #tpu.memory_space<vmem>>, vector<256x128xbf16>
    %cst_20 = arith.constant dense<0.000000e+00> : vector<128x128xf32>
    %26 = tpu.matmul %24, %25, %cst_20 {dimension_numbers = #tpu.dot_dimension_numbers<[1], [0], [0], [1], [0, 0, 1, 1], [], []>} : vector<128x256xbf16>, vector<256x128xbf16>, vector<128x128xf32> -> vector<128x128xf32>
    %c0_21 = arith.constant 0 : index
    %c0_22 = arith.constant 0 : index
    %27 = vector.load %arg9[%c0_21, %c0_22] : memref<1x128xf32, #tpu.memory_space<vmem>>, vector<1x128xf32>
    %28 = vector.broadcast %27 : vector<1x128xf32> to vector<128x128xf32>
    %29 = arith.addf %26, %28 : vector<128x128xf32>
    %cst_23 = arith.constant 0.000000e+00 : f32
    %30 = vector.broadcast %cst_23 : f32 to vector<128x128xf32>
    %31 = arith.maximumf %29, %30 : vector<128x128xf32>
    %32 = arith.truncf %31 : vector<128x128xf32> to vector<128x128xbf16>
    %c0_24 = arith.constant 0 : index
    %c0_25 = arith.constant 0 : index
    %33 = vector.load %arg10[%c0_24, %c0_25] : memref<128x128xbf16, #tpu.memory_space<vmem>>, vector<128x128xbf16>
    %cst_26 = arith.constant dense<0.000000e+00> : vector<128x128xf32>
    %34 = tpu.matmul %32, %33, %cst_26 {dimension_numbers = #tpu.dot_dimension_numbers<[1], [0], [0], [1], [0, 0, 1, 1], [], []>} : vector<128x128xbf16>, vector<128x128xbf16>, vector<128x128xf32> -> vector<128x128xf32>
    %c0_27 = arith.constant 0 : index
    %c0_28 = arith.constant 0 : index
    %35 = vector.load %arg11[%c0_27, %c0_28] : memref<1x128xf32, #tpu.memory_space<vmem>>, vector<1x128xf32>
    %36 = vector.broadcast %35 : vector<1x128xf32> to vector<128x128xf32>
    %37 = arith.addf %34, %36 : vector<128x128xf32>
    %cst_29 = arith.constant 0.000000e+00 : f32
    %38 = vector.broadcast %cst_29 : f32 to vector<128x128xf32>
    %39 = arith.maximumf %37, %38 : vector<128x128xf32>
    %40 = arith.truncf %39 : vector<128x128xf32> to vector<128x128xbf16>
    %c0_30 = arith.constant 0 : index
    %c0_31 = arith.constant 0 : index
    %41 = vector.load %arg12[%c0_30, %c0_31] : memref<128x128xbf16, #tpu.memory_space<vmem>>, vector<128x128xbf16>
    %cst_32 = arith.constant dense<0.000000e+00> : vector<128x128xf32>
    %42 = tpu.matmul %40, %41, %cst_32 {dimension_numbers = #tpu.dot_dimension_numbers<[1], [0], [0], [1], [0, 0, 1, 1], [], []>} : vector<128x128xbf16>, vector<128x128xbf16>, vector<128x128xf32> -> vector<128x128xf32>
    %c0_33 = arith.constant 0 : index
    %c0_34 = arith.constant 0 : index
    %43 = vector.load %arg13[%c0_33, %c0_34] : memref<1x128xf32, #tpu.memory_space<vmem>>, vector<1x128xf32>
    %44 = vector.broadcast %43 : vector<1x128xf32> to vector<128x128xf32>
    %45 = arith.addf %42, %44 : vector<128x128xf32>
    %c0_35 = arith.constant 0 : index
    %c0_36 = arith.constant 0 : index
    %46 = vector.load %arg14[%c0_35, %c0_36] : memref<128x128xf32, #tpu.memory_space<vmem>>, vector<128x128xf32>
    tpu.vector_store %arg14[%c0_35, %c0_36], %45 {strides = array<i32>} : memref<128x128xf32, #tpu.memory_space<vmem>>, vector<128x128xf32>,
    return
  }
  func.func @transform_0(%arg0: i32) -> (i32, i32) {
    %c0_i32 = arith.constant 0 : i32
    %c0_i32_0 = arith.constant 0 : i32
    return %arg0, %c0_i32 : i32, i32
  }
  func.func @transform_1(%arg0: i32) -> (i32, i32) {
    %c0_i32 = arith.constant 0 : i32
    %c0_i32_0 = arith.constant 0 : i32
    %c0_i32_1 = arith.constant 0 : i32
    return %c0_i32, %c0_i32_0 : i32, i32
  }
  func.func @transform_2(%arg0: i32) -> (i32, i32) {
    %c0_i32 = arith.constant 0 : i32
    %c0_i32_0 = arith.constant 0 : i32
    %c0_i32_1 = arith.constant 0 : i32
    return %c0_i32, %c0_i32_0 : i32, i32
  }
  func.func @transform_3(%arg0: i32) -> (i32, i32) {
    %c0_i32 = arith.constant 0 : i32
    %c0_i32_0 = arith.constant 0 : i32
    %c0_i32_1 = arith.constant 0 : i32
    return %c0_i32, %c0_i32_0 : i32, i32
  }
  func.func @transform_4(%arg0: i32) -> (i32, i32) {
    %c0_i32 = arith.constant 0 : i32
    %c0_i32_0 = arith.constant 0 : i32
    %c0_i32_1 = arith.constant 0 : i32
    return %c0_i32, %c0_i32_0 : i32, i32
  }
  func.func @transform_5(%arg0: i32) -> (i32, i32) {
    %c0_i32 = arith.constant 0 : i32
    %c0_i32_0 = arith.constant 0 : i32
    %c0_i32_1 = arith.constant 0 : i32
    return %c0_i32, %c0_i32_0 : i32, i32
  }
  func.func @transform_6(%arg0: i32) -> (i32, i32) {
    %c0_i32 = arith.constant 0 : i32
    %c0_i32_0 = arith.constant 0 : i32
    %c0_i32_1 = arith.constant 0 : i32
    return %c0_i32, %c0_i32_0 : i32, i32
  }
  func.func @transform_7(%arg0: i32) -> (i32, i32) {
    %c0_i32 = arith.constant 0 : i32
    %c0_i32_0 = arith.constant 0 : i32
    %c0_i32_1 = arith.constant 0 : i32
    return %c0_i32, %c0_i32_0 : i32, i32
  }
  func.func @transform_8(%arg0: i32) -> (i32, i32) {
    %c0_i32 = arith.constant 0 : i32
    %c0_i32_0 = arith.constant 0 : i32
    %c0_i32_1 = arith.constant 0 : i32
    return %c0_i32, %c0_i32_0 : i32, i32
  }
  func.func @transform_9(%arg0: i32) -> (i32, i32) {
    %c0_i32 = arith.constant 0 : i32
    %c0_i32_0 = arith.constant 0 : i32
    %c0_i32_1 = arith.constant 0 : i32
    return %c0_i32, %c0_i32_0 : i32, i32
  }
  func.func @transform_10(%arg0: i32) -> (i32, i32) {
    %c0_i32 = arith.constant 0 : i32
    %c0_i32_0 = arith.constant 0 : i32
    %c0_i32_1 = arith.constant 0 : i32
    return %c0_i32, %c0_i32_0 : i32, i32
  }
  func.func @transform_11(%arg0: i32) -> (i32, i32) {
    %c0_i32 = arith.constant 0 : i32
    %c0_i32_0 = arith.constant 0 : i32
    %c0_i32_1 = arith.constant 0 : i32
    return %c0_i32, %c0_i32_0 : i32, i32
  }
  func.func @transform_12(%arg0: i32) -> (i32, i32) {
    %c0_i32 = arith.constant 0 : i32
    %c0_i32_0 = arith.constant 0 : i32
    %c0_i32_1 = arith.constant 0 : i32
    return %c0_i32, %c0_i32_0 : i32, i32
  }
  func.func @transform_13(%arg0: i32) -> (i32, i32) {
    %c0_i32 = arith.constant 0 : i32
    %c0_i32_0 = arith.constant 0 : i32
    return %arg0, %c0_i32 : i32, i32
  }
}

</mosaic_0001>

<llo_original>
// kernel: tpu_custom_call.1
$region0: #{tpu_custom_call.1}
  #allocation0 [shape = 'u32[]', space=smem, size = 0x4, offset = 0x4, fixed_abs, tag = 'smem constant byte address 0x4 - core index']
  #allocation1 [shape = 'u32[72,128]{1,0:T(1,128)}', space=vmem, size = 0x9000, scoped, tag = 'internal scratch']
  %s0 = inlined_call_operand.hbm [shape: bf16[256,128], index: 0, kind: input, shape index: {}]
  %s1 = inlined_call_operand.hbm [shape: bf16[128,128], index: 1, kind: input, shape index: {}]
  %s2 = inlined_call_operand.vmem [shape: f32[1,128], index: 2, kind: input, shape index: {}]
  %s3 = inlined_call_operand.hbm [shape: bf16[128,128], index: 3, kind: input, shape index: {}]
  %s4 = inlined_call_operand.hbm [shape: f32[1,128], index: 4, kind: input, shape index: {}]
  %s5 = inlined_call_operand.hbm [shape: bf16[128,256], index: 5, kind: input, shape index: {}]
  %s6 = inlined_call_operand.vmem [shape: f32[1,256], index: 6, kind: input, shape index: {}]
  %s7 = inlined_call_operand.hbm [shape: bf16[256,128], index: 7, kind: input, shape index: {}]
  %s8 = inlined_call_operand.vmem [shape: f32[1,128], index: 8, kind: input, shape index: {}]
  %s9 = inlined_call_operand.hbm [shape: bf16[128,128], index: 9, kind: input, shape index: {}]
  %s10 = inlined_call_operand.vmem [shape: f32[1,128], index: 10, kind: input, shape index: {}]
  %s11 = inlined_call_operand.hbm [shape: bf16[128,128], index: 11, kind: input, shape index: {}]
  %s12 = inlined_call_operand.vmem [shape: f32[1,128], index: 12, kind: input, shape index: {}]
  %s13 = inlined_call_operand.hbm [shape: f32[256,128], index: 13, kind: output, shape index: {}]
  %s14 = sld [smem:[#allocation0]]
  $region117: #{tpu_custom_call.1} parent=0
    _
  %s16 = ssub.s32 1, %s14
  %s17 = scalar_select 0, %s16, %s14
  $region1: #{tpu_custom_call.1} parent=0
    #allocation2 [shape = 'u8[65536]{0}', space=vmem, size = 0x10000, scoped, tag = 'input window, operand 0']
    #allocation3 [shape = 's32[2]{0}', space=sflag, size = 0x8, scoped, tag = 'scoped memory for tpu_custom_call.1']
    #allocation4 [shape = 's32[2]{0}', space=sflag, size = 0x8, scoped, tag = 'scoped memory for tpu_custom_call.1']
    #allocation5 [shape = 'u8[32768]{0}', space=vmem, size = 0x8000, scoped, tag = 'input window, operand 1, single buffered']
    #allocation6 [shape = 's32[1]{0}', space=sflag, size = 0x4, scoped, tag = 'scoped memory for tpu_custom_call.1']
    #allocation7 [shape = 'u8[32768]{0}', space=vmem, size = 0x8000, scoped, tag = 'input window, operand 3, single buffered']
    #allocation8 [shape = 'u8[512]{0}', space=vmem, size = 0x400, scoped, tag = 'input window, operand 4, single buffered']
    #allocation9 [shape = 's32[1]{0}', space=sflag, size = 0x4, scoped, tag = 'scoped memory for tpu_custom_call.1']
    #allocation10 [shape = 'u8[65536]{0}', space=vmem, size = 0x10000, scoped, tag = 'input window, operand 5, single buffered']
    #allocation11 [shape = 'u8[65536]{0}', space=vmem, size = 0x10000, scoped, tag = 'input window, operand 7, single buffered']
    #allocation12 [shape = 's32[1]{0}', space=sflag, size = 0x4, scoped, tag = 'scoped memory for tpu_custom_call.1']
    #allocation13 [shape = 'u8[32768]{0}', space=vmem, size = 0x8000, scoped, tag = 'input window, operand 9, single buffered']
    #allocation14 [shape = 'u8[32768]{0}', space=vmem, size = 0x8000, scoped, tag = 'input window, operand 11, single buffered']
    #allocation15 [shape = 's32[1]{0}', space=sflag, size = 0x4, scoped, tag = 'scoped memory for tpu_custom_call.1']
    #allocation16 [shape = 'u8[131072]{0}', space=vmem, size = 0x20000, scoped, tag = 'output window, operand 0']
    %18 = vsyncpa [#allocation3], 0
    %s19 = scalar_lea.sflag [#allocation3], 1
    %20 = vsyncpa %s19, 0
    %21 = vsyncpa [#allocation6], 0
    %22 = vsyncpa [#allocation9], 0
    %23 = vsyncpa [#allocation12], 0
    %24 = vsyncpa [#allocation15], 0
    %25 = vsyncpa [#allocation4], 0
    %s26 = scalar_lea.sflag [#allocation4], 1
    %27 = vsyncpa %s26, 0
    loop: start=0, step=1, limit=4
    $region2: #{tpu_custom_call.1} parent=1 // loop_pre_header
      _
    $region3: #{tpu_custom_call.1} parent=1 // loop_header
      %s29 = sphi 0, %s33
      %p30 = scmp.ge.s32.totalorder %s29, 4
      %s39 = sphi 0, %s41
      %s42 = sphi 0, %s39
      %s43 = sphi 0, %s42
      %s59 = sphi 0, %s43
      %s63 = sphi 0, %s63
      %s65 = sphi 0, %s63
      %s66 = sphi 0, %s65
      %s80 = sphi 0, %s66
      %s84 = sphi 0, %s84
      %s86 = sphi 0, %s84
      %s87 = sphi 0, %s86
      %s101 = sphi 0, %s87
      %s105 = sphi 0, %s105
      %s107 = sphi 0, %s105
      %s108 = sphi 0, %s107
      %s122 = sphi 0, %s108
      %s126 = sphi 0, %s126
      %s128 = sphi 0, %s126
      %s129 = sphi 0, %s128
      %s143 = sphi 0, %s129
      %s147 = sphi 0, %s147
      %s149 = sphi 0, %s147
      %s150 = sphi 0, %s149
      %s164 = sphi 0, %s150
      %s168 = sphi 0, %s168
      %s170 = sphi 0, %s168
      %s171 = sphi 0, %s170
      %s185 = sphi 0, %s171
      %s189 = sphi 0, %s189
      %s191 = sphi 0, %s189
      %s192 = sphi 0, %s191
      %s206 = sphi 0, %s192
      %s210 = sphi 0, %s210
      %s212 = sphi 0, %s210
      %s213 = sphi 0, %s212
      %s227 = sphi 0, %s213
      %s231 = sphi 0, %s231
      %s233 = sphi 0, %s231
      %s234 = sphi 0, %s233
      %s248 = sphi 0, %s234
      %s252 = sphi 0, %s252
      %s254 = sphi 0, %s252
      %s255 = sphi 0, %s254
      %s269 = sphi 0, %s255
      %s273 = sphi 0, %s273
      %s275 = sphi 0, %s273
      %s276 = sphi 0, %s275
      %s290 = sphi 0, %s276
      %s294 = sphi 0, %s294
      %s296 = sphi 0, %s294
      %s297 = sphi 0, %s296
      %s311 = sphi 0, %s297
      %s317 = sphi 0, %s319
      %s320 = sphi 0, %s317
      %s321 = sphi 0, %s320
      %s337 = sphi 0, %s321
    $region4: #{tpu_custom_call.1} parent=1 // loop_header_branch
      %32 = sbr.rel (%p30) target = $region8
    $region5: #{tpu_custom_call.1} parent=1 // loop_body
      %s34 = ssub.s32 %s29, 1
      %s35 = ssub.s32 %s29, 2
      %s36 = sadd.s32 %s29, 1
      %s37 = ssub.s32 %s29, %s36
      %p38 = scmp.eq.s32.totalorder %s37, 0
      %s40 = sadd.s32 %s39, 1
      %s41 = scalar_select %p38, %s39, %s40
      %p44 = pneg %p38
      %p45 = scmp.eq.s32.totalorder %s29, 1
      %p46 = por %p44, %p45
      %p47 = scmp.ne.s32.totalorder %s39, %s42
      %p48 = scmp.eq.s32.totalorder %s29, 0
      %p49 = por %p47, %p48
      %p50 = scmp.ne.s32.totalorder %s39, %s42
      %p51 = scmp.eq.s32.totalorder %s34, 1
      %p52 = por %p50, %p51
      %p53 = scmp.ne.s32.totalorder %s42, %s43
      %p54 = scmp.eq.s32.totalorder %s34, 0
      %p55 = por %p53, %p54
      %p56 = scmp.ne.s32.totalorder %s42, %s43
      %p57 = scmp.eq.s32.totalorder %s35, 1
      %p58 = por %p56, %p57
      %p60 = scmp.ne.s32.totalorder %s43, %s59
      %p61 = scmp.eq.s32.totalorder %s35, 0
      %p62 = por %p60, %p61
      %s64 = sadd.s32 %s63, 1
      %p67 = scmp.eq.s32.totalorder %s29, 1
      %p68 = scmp.ne.s32.totalorder %s63, %s65
      %p69 = scmp.eq.s32.totalorder %s29, 0
      %p70 = por %p68, %p69
      %p71 = scmp.ne.s32.totalorder %s63, %s65
      %p72 = scmp.eq.s32.totalorder %s34, 1
      %p73 = por %p71, %p72
      %p74 = scmp.ne.s32.totalorder %s65, %s66
      %p75 = scmp.eq.s32.totalorder %s34, 0
      %p76 = por %p74, %p75
      %p77 = scmp.ne.s32.totalorder %s65, %s66
      %p78 = scmp.eq.s32.totalorder %s35, 1
      %p79 = por %p77, %p78
      %p81 = scmp.ne.s32.totalorder %s66, %s80
      %p82 = scmp.eq.s32.totalorder %s35, 0
      %p83 = por %p81, %p82
      %s85 = sadd.s32 %s84, 1
      %p88 = scmp.eq.s32.totalorder %s29, 1
      %p89 = scmp.ne.s32.totalorder %s84, %s86
      %p90 = scmp.eq.s32.totalorder %s29, 0
      %p91 = por %p89, %p90
      %p92 = scmp.ne.s32.totalorder %s84, %s86
      %p93 = scmp.eq.s32.totalorder %s34, 1
      %p94 = por %p92, %p93
      %p95 = scmp.ne.s32.totalorder %s86, %s87
      %p96 = scmp.eq.s32.totalorder %s34, 0
      %p97 = por %p95, %p96
      %p98 = scmp.ne.s32.totalorder %s86, %s87
      %p99 = scmp.eq.s32.totalorder %s35, 1
      %p100 = por %p98, %p99
      %p102 = scmp.ne.s32.totalorder %s87, %s101
      %p103 = scmp.eq.s32.totalorder %s35, 0
      %p104 = por %p102, %p103
      %s106 = sadd.s32 %s105, 1
      %p109 = scmp.eq.s32.totalorder %s29, 1
      %p110 = scmp.ne.s32.totalorder %s105, %s107
      %p111 = scmp.eq.s32.totalorder %s29, 0
      %p112 = por %p110, %p111
      %p113 = scmp.ne.s32.totalorder %s105, %s107
      %p114 = scmp.eq.s32.totalorder %s34, 1
      %p115 = por %p113, %p114
      %p116 = scmp.ne.s32.totalorder %s107, %s108
      %p117 = scmp.eq.s32.totalorder %s34, 0
      %p118 = por %p116, %p117
      %p119 = scmp.ne.s32.totalorder %s107, %s108
      %p120 = scmp.eq.s32.totalorder %s35, 1
      %p121 = por %p119, %p120
      %p123 = scmp.ne.s32.totalorder %s108, %s122
      %p124 = scmp.eq.s32.totalorder %s35, 0
      %p125 = por %p123, %p124
      %s127 = sadd.s32 %s126, 1
      %p130 = scmp.eq.s32.totalorder %s29, 1
      %p131 = scmp.ne.s32.totalorder %s126, %s128
      %p132 = scmp.eq.s32.totalorder %s29, 0
      %p133 = por %p131, %p132
      %p134 = scmp.ne.s32.totalorder %s126, %s128
      %p135 = scmp.eq.s32.totalorder %s34, 1
      %p136 = por %p134, %p135
      %p137 = scmp.ne.s32.totalorder %s128, %s129
      %p138 = scmp.eq.s32.totalorder %s34, 0
      %p139 = por %p137, %p138
      %p140 = scmp.ne.s32.totalorder %s128, %s129
      %p141 = scmp.eq.s32.totalorder %s35, 1
      %p142 = por %p140, %p141
      %p144 = scmp.ne.s32.totalorder %s129, %s143
      %p145 = scmp.eq.s32.totalorder %s35, 0
      %p146 = por %p144, %p145
      %s148 = sadd.s32 %s147, 1
      %p151 = scmp.eq.s32.totalorder %s29, 1
      %p152 = scmp.ne.s32.totalorder %s147, %s149
      %p153 = scmp.eq.s32.totalorder %s29, 0
      %p154 = por %p152, %p153
      %p155 = scmp.ne.s32.totalorder %s147, %s149
      %p156 = scmp.eq.s32.totalorder %s34, 1
      %p157 = por %p155, %p156
      %p158 = scmp.ne.s32.totalorder %s149, %s150
      %p159 = scmp.eq.s32.totalorder %s34, 0
      %p160 = por %p158, %p159
      %p161 = scmp.ne.s32.totalorder %s149, %s150
      %p162 = scmp.eq.s32.totalorder %s35, 1
      %p163 = por %p161, %p162
      %p165 = scmp.ne.s32.totalorder %s150, %s164
      %p166 = scmp.eq.s32.totalorder %s35, 0
      %p167 = por %p165, %p166
      %s169 = sadd.s32 %s168, 1
      %p172 = scmp.eq.s32.totalorder %s29, 1
      %p173 = scmp.ne.s32.totalorder %s168, %s170
      %p174 = scmp.eq.s32.totalorder %s29, 0
      %p175 = por %p173, %p174
      %p176 = scmp.ne.s32.totalorder %s168, %s170
      %p177 = scmp.eq.s32.totalorder %s34, 1
      %p178 = por %p176, %p177
      %p179 = scmp.ne.s32.totalorder %s170, %s171
      %p180 = scmp.eq.s32.totalorder %s34, 0
      %p181 = por %p179, %p180
      %p182 = scmp.ne.s32.totalorder %s170, %s171
      %p183 = scmp.eq.s32.totalorder %s35, 1
      %p184 = por %p182, %p183
      %p186 = scmp.ne.s32.totalorder %s171, %s185
      %p187 = scmp.eq.s32.totalorder %s35, 0
      %p188 = por %p186, %p187
      %s190 = sadd.s32 %s189, 1
      %p193 = scmp.eq.s32.totalorder %s29, 1
      %p194 = scmp.ne.s32.totalorder %s189, %s191
      %p195 = scmp.eq.s32.totalorder %s29, 0
      %p196 = por %p194, %p195
      %p197 = scmp.ne.s32.totalorder %s189, %s191
      %p198 = scmp.eq.s32.totalorder %s34, 1
      %p199 = por %p197, %p198
      %p200 = scmp.ne.s32.totalorder %s191, %s192
      %p201 = scmp.eq.s32.totalorder %s34, 0
      %p202 = por %p200, %p201
      %p203 = scmp.ne.s32.totalorder %s191, %s192
      %p204 = scmp.eq.s32.totalorder %s35, 1
      %p205 = por %p203, %p204
      %p207 = scmp.ne.s32.totalorder %s192, %s206
      %p208 = scmp.eq.s32.totalorder %s35, 0
      %p209 = por %p207, %p208
      %s211 = sadd.s32 %s210, 1
      %p214 = scmp.eq.s32.totalorder %s29, 1
      %p215 = scmp.ne.s32.totalorder %s210, %s212
      %p216 = scmp.eq.s32.totalorder %s29, 0
      %p217 = por %p215, %p216
      %p218 = scmp.ne.s32.totalorder %s210, %s212
      %p219 = scmp.eq.s32.totalorder %s34, 1
      %p220 = por %p218, %p219
      %p221 = scmp.ne.s32.totalorder %s212, %s213
      %p222 = scmp.eq.s32.totalorder %s34, 0
      %p223 = por %p221, %p222
      %p224 = scmp.ne.s32.totalorder %s212, %s213
      %p225 = scmp.eq.s32.totalorder %s35, 1
      %p226 = por %p224, %p225
      %p228 = scmp.ne.s32.totalorder %s213, %s227
      %p229 = scmp.eq.s32.totalorder %s35, 0
      %p230 = por %p228, %p229
      %s232 = sadd.s32 %s231, 1
      %p235 = scmp.eq.s32.totalorder %s29, 1
      %p236 = scmp.ne.s32.totalorder %s231, %s233
      %p237 = scmp.eq.s32.totalorder %s29, 0
      %p238 = por %p236, %p237
      %p239 = scmp.ne.s32.totalorder %s231, %s233
      %p240 = scmp.eq.s32.totalorder %s34, 1
      %p241 = por %p239, %p240
      %p242 = scmp.ne.s32.totalorder %s233, %s234
      %p243 = scmp.eq.s32.totalorder %s34, 0
      %p244 = por %p242, %p243
      %p245 = scmp.ne.s32.totalorder %s233, %s234
      %p246 = scmp.eq.s32.totalorder %s35, 1
      %p247 = por %p245, %p246
      %p249 = scmp.ne.s32.totalorder %s234, %s248
      %p250 = scmp.eq.s32.totalorder %s35, 0
      %p251 = por %p249, %p250
      %s253 = sadd.s32 %s252, 1
      %p256 = scmp.eq.s32.totalorder %s29, 1
      %p257 = scmp.ne.s32.totalorder %s252, %s254
      %p258 = scmp.eq.s32.totalorder %s29, 0
      %p259 = por %p257, %p258
      %p260 = scmp.ne.s32.totalorder %s252, %s254
      %p261 = scmp.eq.s32.totalorder %s34, 1
      %p262 = por %p260, %p261
      %p263 = scmp.ne.s32.totalorder %s254, %s255
      %p264 = scmp.eq.s32.totalorder %s34, 0
      %p265 = por %p263, %p264
      %p266 = scmp.ne.s32.totalorder %s254, %s255
      %p267 = scmp.eq.s32.totalorder %s35, 1
      %p268 = por %p266, %p267
      %p270 = scmp.ne.s32.totalorder %s255, %s269
      %p271 = scmp.eq.s32.totalorder %s35, 0
      %p272 = por %p270, %p271
      %s274 = sadd.s32 %s273, 1
      %p277 = scmp.eq.s32.totalorder %s29, 1
      %p278 = scmp.ne.s32.totalorder %s273, %s275
      %p279 = scmp.eq.s32.totalorder %s29, 0
      %p280 = por %p278, %p279
      %p281 = scmp.ne.s32.totalorder %s273, %s275
      %p282 = scmp.eq.s32.totalorder %s34, 1
      %p283 = por %p281, %p282
      %p284 = scmp.ne.s32.totalorder %s275, %s276
      %p285 = scmp.eq.s32.totalorder %s34, 0
      %p286 = por %p284, %p285
      %p287 = scmp.ne.s32.totalorder %s275, %s276
      %p288 = scmp.eq.s32.totalorder %s35, 1
      %p289 = por %p287, %p288
      %p291 = scmp.ne.s32.totalorder %s276, %s290
      %p292 = scmp.eq.s32.totalorder %s35, 0
      %p293 = por %p291, %p292
      %s295 = sadd.s32 %s294, 1
      %p298 = scmp.eq.s32.totalorder %s29, 1
      %p299 = scmp.ne.s32.totalorder %s294, %s296
      %p300 = scmp.eq.s32.totalorder %s29, 0
      %p301 = por %p299, %p300
      %p302 = scmp.ne.s32.totalorder %s294, %s296
      %p303 = scmp.eq.s32.totalorder %s34, 1
      %p304 = por %p302, %p303
      %p305 = scmp.ne.s32.totalorder %s296, %s297
      %p306 = scmp.eq.s32.totalorder %s34, 0
      %p307 = por %p305, %p306
      %p308 = scmp.ne.s32.totalorder %s296, %s297
      %p309 = scmp.eq.s32.totalorder %s35, 1
      %p310 = por %p308, %p309
      %p312 = scmp.ne.s32.totalorder %s297, %s311
      %p313 = scmp.eq.s32.totalorder %s35, 0
      %p314 = por %p312, %p313
      %s315 = ssub.s32 %s29, %s36
      %p316 = scmp.eq.s32.totalorder %s315, 0
      %s318 = sadd.s32 %s317, 1
      %s319 = scalar_select %p316, %s317, %s318
      %p322 = pneg %p316
      %p323 = scmp.eq.s32.totalorder %s29, 1
      %p324 = por %p322, %p323
      %p325 = scmp.ne.s32.totalorder %s317, %s320
      %p326 = scmp.eq.s32.totalorder %s29, 0
      %p327 = por %p325, %p326
      %p328 = scmp.ne.s32.totalorder %s317, %s320
      %p329 = scmp.eq.s32.totalorder %s34, 1
      %p330 = por %p328, %p329
      %p331 = scmp.ne.s32.totalorder %s320, %s321
      %p332 = scmp.eq.s32.totalorder %s34, 0
      %p333 = por %p331, %p332
      %p334 = scmp.ne.s32.totalorder %s320, %s321
      %p335 = scmp.eq.s32.totalorder %s35, 1
      %p336 = por %p334, %p335
      %p338 = scmp.ne.s32.totalorder %s321, %s337
      %p339 = scmp.eq.s32.totalorder %s35, 0
      %p340 = por %p338, %p339
      %p341 = scmp.le.s32.totalorder 1, %s29
      %p342 = scmp.lt.s32.totalorder %s29, 3
      %p343 = pnand %p341, %p342
      %p344 = pneg %p343
      // Predicated region
      $region9: #{tpu_custom_call.1} parent=5 // pred_check
        _
      $region10: #{tpu_custom_call.1} parent=5 // pred_check_branch
        %346 = sbr.rel (%p343) target = $region12
      $region11: #{tpu_custom_call.1} parent=5 // pred_region
        %s347 = ssub.s32 %s29, 1
        // Predicated region
        $region13: #{tpu_custom_call.1} parent=11 // pred_check
          %p348 = pneg %p76
        $region14: #{tpu_custom_call.1} parent=11 // pred_check_branch
          %350 = sbr.rel (%p348) target = $region16
        $region15: #{tpu_custom_call.1} parent=11 // pred_region
          %352 = vsyncadd [#allocation6], 0
          %s353 = sshll.u32 %s1, 4
          %s354 = int_to_ptr.hbm [resolvable:$true] %s353
          %s355 = sshll.u32 [#allocation5], 4
          %s356 = int_to_ptr.vmem [resolvable:$true] %s355
          %361 = dma.hbm_to_vmem [thread:$0]  %s354, 1024, %s356, [#allocation6], 64, 64, 4
        $region16: #{tpu_custom_call.1} parent=11 // pred_fallthru
          _
        // Predicated region
        $region17: #{tpu_custom_call.1} parent=11 // pred_check
          %p362 = pneg %p97
        $region18: #{tpu_custom_call.1} parent=11 // pred_check_branch
          %364 = sbr.rel (%p362) target = $region20
        $region19: #{tpu_custom_call.1} parent=11 // pred_region
          _
        $region20: #{tpu_custom_call.1} parent=11 // pred_fallthru
          _
        // Predicated region
        $region21: #{tpu_custom_call.1} parent=11 // pred_check
          %p365 = pneg %p118
        $region22: #{tpu_custom_call.1} parent=11 // pred_check_branch
          %367 = sbr.rel (%p365) target = $region24
        $region23: #{tpu_custom_call.1} parent=11 // pred_region
          %369 = vsyncadd [#allocation6], 0
          %s370 = sshll.u32 %s3, 4
          %s371 = int_to_ptr.hbm [resolvable:$true] %s370
          %s372 = sshll.u32 [#allocation7], 4
          %s373 = int_to_ptr.vmem [resolvable:$true] %s372
          %378 = dma.hbm_to_vmem [thread:$0]  %s371, 1024, %s373, [#allocation6], 64, 64, 4
        $region24: #{tpu_custom_call.1} parent=11 // pred_fallthru
          _
        // Predicated region
        $region25: #{tpu_custom_call.1} parent=11 // pred_check
          %p379 = pneg %p139
        $region26: #{tpu_custom_call.1} parent=11 // pred_check_branch
          %381 = sbr.rel (%p379) target = $region28
        $region27: #{tpu_custom_call.1} parent=11 // pred_region
          %383 = vsyncadd [#allocation9], 0
          %s385 = sshll.u32 %s4, 4
          %s386 = int_to_ptr.hbm [resolvable:$true] %s385
          %s387 = sshll.u32 [#allocation8], 4
          %s388 = int_to_ptr.vmem [resolvable:$true] %s387
          %390 = dma.hbm_to_vmem [thread:$0]  %s386, 16, %s388, [#allocation9]
        $region28: #{tpu_custom_call.1} parent=11 // pred_fallthru
          _
        // Predicated region
        $region29: #{tpu_custom_call.1} parent=11 // pred_check
          %p391 = pneg %p160
        $region30: #{tpu_custom_call.1} parent=11 // pred_check_branch
          %393 = sbr.rel (%p391) target = $region32
        $region31: #{tpu_custom_call.1} parent=11 // pred_region
          %395 = vsyncadd [#allocation9], 0
          %s396 = sshll.u32 %s5, 4
          %s397 = int_to_ptr.hbm [resolvable:$true] %s396
          %s398 = sshll.u32 [#allocation10], 4
          %s399 = int_to_ptr.vmem [resolvable:$true] %s398
          %404 = dma.hbm_to_vmem [thread:$0]  %s397, 2048, %s399, [#allocation9], 128, 128, 8
        $region32: #{tpu_custom_call.1} parent=11 // pred_fallthru
          _
        // Predicated region
        $region33: #{tpu_custom_call.1} parent=11 // pred_check
          %p405 = pneg %p181
        $region34: #{tpu_custom_call.1} parent=11 // pred_check_branch
          %407 = sbr.rel (%p405) target = $region36
        $region35: #{tpu_custom_call.1} parent=11 // pred_region
          _
        $region36: #{tpu_custom_call.1} parent=11 // pred_fallthru
          _
        // Predicated region
        $region37: #{tpu_custom_call.1} parent=11 // pred_check
          %p408 = pneg %p202
        $region38: #{tpu_custom_call.1} parent=11 // pred_check_branch
          %410 = sbr.rel (%p408) target = $region40
        $region39: #{tpu_custom_call.1} parent=11 // pred_region
          %412 = vsyncadd [#allocation12], 0
          %s413 = sshll.u32 %s7, 4
          %s414 = int_to_ptr.hbm [resolvable:$true] %s413
          %s415 = sshll.u32 [#allocation11], 4
          %s416 = int_to_ptr.vmem [resolvable:$true] %s415
          %421 = dma.hbm_to_vmem [thread:$0]  %s414, 2048, %s416, [#allocation12], 64, 64, 4
        $region40: #{tpu_custom_call.1} parent=11 // pred_fallthru
          _
        // Predicated region
        $region41: #{tpu_custom_call.1} parent=11 // pred_check
          %p422 = pneg %p223
        $region42: #{tpu_custom_call.1} parent=11 // pred_check_branch
          %424 = sbr.rel (%p422) target = $region44
        $region43: #{tpu_custom_call.1} parent=11 // pred_region
          _
        $region44: #{tpu_custom_call.1} parent=11 // pred_fallthru
          _
        // Predicated region
        $region45: #{tpu_custom_call.1} parent=11 // pred_check
          %p425 = pneg %p244
        $region46: #{tpu_custom_call.1} parent=11 // pred_check_branch
          %427 = sbr.rel (%p425) target = $region48
        $region47: #{tpu_custom_call.1} parent=11 // pred_region
          %429 = vsyncadd [#allocation12], 0
          %s430 = sshll.u32 %s9, 4
          %s431 = int_to_ptr.hbm [resolvable:$true] %s430
          %s432 = sshll.u32 [#allocation13], 4
          %s433 = int_to_ptr.vmem [resolvable:$true] %s432
          %438 = dma.hbm_to_vmem [thread:$0]  %s431, 1024, %s433, [#allocation12], 64, 64, 4
        $region48: #{tpu_custom_call.1} parent=11 // pred_fallthru
          _
        // Predicated region
        $region49: #{tpu_custom_call.1} parent=11 // pred_check
          %p439 = pneg %p265
        $region50: #{tpu_custom_call.1} parent=11 // pred_check_branch
          %441 = sbr.rel (%p439) target = $region52
        $region51: #{tpu_custom_call.1} parent=11 // pred_region
          _
        $region52: #{tpu_custom_call.1} parent=11 // pred_fallthru
          _
        // Predicated region
        $region53: #{tpu_custom_call.1} parent=11 // pred_check
          %p442 = pneg %p286
        $region54: #{tpu_custom_call.1} parent=11 // pred_check_branch
          %444 = sbr.rel (%p442) target = $region56
        $region55: #{tpu_custom_call.1} parent=11 // pred_region
          %446 = vsyncadd [#allocation15], 0
          %s447 = sshll.u32 %s11, 4
          %s448 = int_to_ptr.hbm [resolvable:$true] %s447
          %s449 = sshll.u32 [#allocation14], 4
          %s450 = int_to_ptr.vmem [resolvable:$true] %s449
          %455 = dma.hbm_to_vmem [thread:$0]  %s448, 1024, %s450, [#allocation15], 64, 64, 4
        $region56: #{tpu_custom_call.1} parent=11 // pred_fallthru
          _
        // Predicated region
        $region57: #{tpu_custom_call.1} parent=11 // pred_check
          %p456 = pneg %p307
        $region58: #{tpu_custom_call.1} parent=11 // pred_check_branch
          %458 = sbr.rel (%p456) target = $region60
        $region59: #{tpu_custom_call.1} parent=11 // pred_region
          _
        $region60: #{tpu_custom_call.1} parent=11 // pred_fallthru
          _
      $region12: #{tpu_custom_call.1} parent=5 // pred_fallthru
        _
      %p459 = scmp.lt.s32.totalorder %s29, 2
      // Predicated region
      $region61: #{tpu_custom_call.1} parent=5 // pred_check
        %p460 = pneg %p459
      $region62: #{tpu_custom_call.1} parent=5 // pred_check_branch
        %462 = sbr.rel (%p460) target = $region64
      $region63: #{tpu_custom_call.1} parent=5 // pred_region
        // Predicated region
        $region65: #{tpu_custom_call.1} parent=63 // pred_check
          %p463 = pneg %p49
        $region66: #{tpu_custom_call.1} parent=63 // pred_check_branch
          %465 = sbr.rel (%p463) target = $region68
        $region67: #{tpu_custom_call.1} parent=63 // pred_region
          %s466 = sand.u32 %s39, 1
          %s467 = scalar_lea.sflag [#allocation3], %s466
          %s468 = sand.u32 %s39, 1
          %s469 = smul.addr %s468, 64
          %s470 = scalar_lea.vmem [#allocation2], %s469
          %s471 = smul.u32 16, %s29
          %473 = vsyncadd %s467, 0
          %s474 = smul.addr %s471, 4
          %s475 = scalar_lea.hbm %s0, %s474
          %s476 = sshll.u32 %s475, 4
          %s477 = int_to_ptr.hbm [resolvable:$true] %s476
          %s478 = sshll.u32 %s470, 4
          %s479 = int_to_ptr.vmem [resolvable:$true] %s478
          %484 = dma.hbm_to_vmem [thread:$0]  %s477, 1024, %s479, %s467, 64, 64, 4
        $region68: #{tpu_custom_call.1} parent=63 // pred_fallthru
          _
      $region64: #{tpu_custom_call.1} parent=5 // pred_fallthru
        _
      %p485 = scmp.le.s32.totalorder 1, %s29
      %p486 = scmp.lt.s32.totalorder %s29, 3
      %p487 = pnand %p485, %p486
      %p488 = pneg %p487
      // Predicated region
      $region69: #{tpu_custom_call.1} parent=5 // pred_check
        _
      $region70: #{tpu_custom_call.1} parent=5 // pred_check_branch
        %490 = sbr.rel (%p487) target = $region72
      $region71: #{tpu_custom_call.1} parent=5 // pred_region
        %s491 = ssub.s32 %s29, 1
        %s492 = sand.u32 %s42, 1
        %s493 = scalar_lea.sflag [#allocation3], %s492
        %s494 = sand.u32 %s42, 1
        %s495 = smul.addr %s494, 64
        %s496 = scalar_lea.vmem [#allocation2], %s495
        // Predicated region
        $region73: #{tpu_custom_call.1} parent=71 // pred_check
          %p497 = pneg %p55
        $region74: #{tpu_custom_call.1} parent=71 // pred_check_branch
          %499 = sbr.rel (%p497) target = $region76
        $region75: #{tpu_custom_call.1} parent=71 // pred_region
          %501 = dma.done %s493, 1024
        $region76: #{tpu_custom_call.1} parent=71 // pred_fallthru
          _
        // Predicated region
        $region77: #{tpu_custom_call.1} parent=71 // pred_check
          %p502 = pneg %p76
        $region78: #{tpu_custom_call.1} parent=71 // pred_check_branch
          %504 = sbr.rel (%p502) target = $region80
        $region79: #{tpu_custom_call.1} parent=71 // pred_region
          %506 = dma.done [#allocation6], 1024
        $region80: #{tpu_custom_call.1} parent=71 // pred_fallthru
          _
        // Predicated region
        $region81: #{tpu_custom_call.1} parent=71 // pred_check
          %p507 = pneg %p118
        $region82: #{tpu_custom_call.1} parent=71 // pred_check_branch
          %509 = sbr.rel (%p507) target = $region84
        $region83: #{tpu_custom_call.1} parent=71 // pred_region
          %511 = dma.done [#allocation6], 1024
        $region84: #{tpu_custom_call.1} parent=71 // pred_fallthru
          _
        // Predicated region
        $region85: #{tpu_custom_call.1} parent=71 // pred_check
          %p512 = pneg %p139
        $region86: #{tpu_custom_call.1} parent=71 // pred_check_branch
          %514 = sbr.rel (%p512) target = $region88
        $region87: #{tpu_custom_call.1} parent=71 // pred_region
          %516 = dma.done [#allocation9], 16
        $region88: #{tpu_custom_call.1} parent=71 // pred_fallthru
          _
        // Predicated region
        $region89: #{tpu_custom_call.1} parent=71 // pred_check
          %p517 = pneg %p160
        $region90: #{tpu_custom_call.1} parent=71 // pred_check_branch
          %519 = sbr.rel (%p517) target = $region92
        $region91: #{tpu_custom_call.1} parent=71 // pred_region
          %521 = dma.done [#allocation9], 2048
        $region92: #{tpu_custom_call.1} parent=71 // pred_fallthru
          _
        // Predicated region
        $region93: #{tpu_custom_call.1} parent=71 // pred_check
          %p522 = pneg %p202
        $region94: #{tpu_custom_call.1} parent=71 // pred_check_branch
          %524 = sbr.rel (%p522) target = $region96
        $region95: #{tpu_custom_call.1} parent=71 // pred_region
          %526 = dma.done [#allocation12], 2048
        $region96: #{tpu_custom_call.1} parent=71 // pred_fallthru
          _
        // Predicated region
        $region97: #{tpu_custom_call.1} parent=71 // pred_check
          %p527 = pneg %p244
        $region98: #{tpu_custom_call.1} parent=71 // pred_check_branch
          %529 = sbr.rel (%p527) target = $region100
        $region99: #{tpu_custom_call.1} parent=71 // pred_region
          %531 = dma.done [#allocation12], 1024
        $region100: #{tpu_custom_call.1} parent=71 // pred_fallthru
          _
        // Predicated region
        $region101: #{tpu_custom_call.1} parent=71 // pred_check
          %p532 = pneg %p286
        $region102: #{tpu_custom_call.1} parent=71 // pred_check_branch
          %534 = sbr.rel (%p532) target = $region104
        $region103: #{tpu_custom_call.1} parent=71 // pred_region
          %536 = dma.done [#allocation15], 1024
        $region104: #{tpu_custom_call.1} parent=71 // pred_fallthru
          _
        %s537 = sand.u32 %s42, 1
        %s538 = scalar_lea.sflag [#allocation3], %s537
        %s539 = sand.u32 %s42, 1
        %s540 = smul.addr %s539, 64
        %s541 = scalar_lea.vmem [#allocation2], %s540
        %p542 = pneg %p55
        %p543 = pneg %p52
        %p544 = pneg %p76
        %p545 = pneg %p73
        %p546 = pneg %p97
        %p547 = pneg %p94
        %p548 = pneg %p118
        %p549 = pneg %p115
        %p550 = pneg %p139
        %p551 = pneg %p136
        %p552 = pneg %p160
        %p553 = pneg %p157
        %p554 = pneg %p181
        %p555 = pneg %p178
        %p556 = pneg %p202
        %p557 = pneg %p199
        %p558 = pneg %p223
        %p559 = pneg %p220
        %p560 = pneg %p244
        %p561 = pneg %p241
        %p562 = pneg %p265
        %p563 = pneg %p262
        %p564 = pneg %p286
        %p565 = pneg %p283
        %p566 = pneg %p307
        %p567 = pneg %p304
        %p568 = pneg %p333
        %p569 = pneg %p330
        %s570 = sand.u32 %s320, 1
        %s571 = scalar_lea.sflag [#allocation4], %s570
        %s572 = sand.u32 %s320, 1
        %s573 = smul.addr %s572, 128
        %s574 = scalar_lea.vmem [#allocation16], %s573
        %s575 = smul.u32 16, %s34
        %s576 = smul.u32 16, %s34
        %v577 = vld [vmem:[%s496] sm:$0xf]
        %v578 = vld [vmem:[%s496 + $0x4] sm:$0xf]
        %v579 = vld [vmem:[%s496 + $0x8] sm:$0xf]
        %v580 = vld [vmem:[%s496 + $0xc] sm:$0xf]
        %v581 = vld [vmem:[%s496 + $0x10] sm:$0xf]
        %v582 = vld [vmem:[%s496 + $0x14] sm:$0xf]
        %v583 = vld [vmem:[%s496 + $0x18] sm:$0xf]
        %v584 = vld [vmem:[%s496 + $0x1c] sm:$0xf]
        %v585 = vld [vmem:[%s496 + $0x20] sm:$0xf]
        %v586 = vld [vmem:[%s496 + $0x24] sm:$0xf]
        %v587 = vld [vmem:[%s496 + $0x28] sm:$0xf]
        %v588 = vld [vmem:[%s496 + $0x2c] sm:$0xf]
        %v589 = vld [vmem:[%s496 + $0x30] sm:$0xf]
        %v590 = vld [vmem:[%s496 + $0x34] sm:$0xf]
        %v591 = vld [vmem:[%s496 + $0x38] sm:$0xf]
        %v592 = vld [vmem:[%s496 + $0x3c] sm:$0xf]
        %v593 = vld [vmem:[#allocation5] sm:$0xf]
        %v594 = vld [vmem:[#allocation5 + $0x4] sm:$0xf]
        %v595 = vld [vmem:[#allocation5 + $0x8] sm:$0xf]
        %v596 = vld [vmem:[#allocation5 + $0xc] sm:$0xf]
        %v597 = vld [vmem:[#allocation5 + $0x10] sm:$0xf]
        %v598 = vld [vmem:[#allocation5 + $0x14] sm:$0xf]
        %v599 = vld [vmem:[#allocation5 + $0x18] sm:$0xf]
        %v600 = vld [vmem:[#allocation5 + $0x1c] sm:$0xf]
        %v601 = vld [vmem:[#allocation5 + $0x20] sm:$0xf]
        %v602 = vld [vmem:[#allocation5 + $0x24] sm:$0xf]
        %v603 = vld [vmem:[#allocation5 + $0x28] sm:$0xf]
        %v604 = vld [vmem:[#allocation5 + $0x2c] sm:$0xf]
        %v605 = vld [vmem:[#allocation5 + $0x30] sm:$0xf]
        %v606 = vld [vmem:[#allocation5 + $0x34] sm:$0xf]
        %v607 = vld [vmem:[#allocation5 + $0x38] sm:$0xf]
        %v608 = vld [vmem:[#allocation5 + $0x3c] sm:$0xf]
        %v609 = vld [vmem:[%s2] sm:$0x1]
        %v611 = vperm.slane %v609, 0
        %v629 = vunpack.c.l.b16 %v577
        %v630 = vunpack.c.l.b16 %v578
        %v631 = vunpack.c.l.b16 %v579
        %v632 = vunpack.c.l.b16 %v580
        %v633 = vunpack.c.l.b16 %v581
        %v634 = vunpack.c.l.b16 %v582
        %v635 = vunpack.c.l.b16 %v583
        %v636 = vunpack.c.l.b16 %v584
        %v637 = vunpack.c.l.b16 %v585
        %v638 = vunpack.c.l.b16 %v586
        %v639 = vunpack.c.l.b16 %v587
        %v640 = vunpack.c.l.b16 %v588
        %v641 = vunpack.c.l.b16 %v589
        %v642 = vunpack.c.l.b16 %v590
        %v643 = vunpack.c.l.b16 %v591
        %v644 = vunpack.c.l.b16 %v592
        %v645 = vpack.c.b16 %v630, %v629
        %v646 = vpack.c.b16 %v632, %v631
        %v647 = vpack.c.b16 %v634, %v633
        %v648 = vpack.c.b16 %v636, %v635
        %v649 = vpack.c.b16 %v638, %v637
        %v650 = vpack.c.b16 %v640, %v639
        %v651 = vpack.c.b16 %v642, %v641
        %v652 = vpack.c.b16 %v644, %v643
        %v677 = vunpack.c.l.b16 %v593
        %v678 = vunpack.c.l.b16 %v594
        %v679 = vunpack.c.l.b16 %v595
        %v680 = vunpack.c.l.b16 %v596
        %v681 = vunpack.c.l.b16 %v597
        %v682 = vunpack.c.l.b16 %v598
        %v683 = vunpack.c.l.b16 %v599
        %v684 = vunpack.c.l.b16 %v600
        %v685 = vunpack.c.l.b16 %v601
        %v686 = vunpack.c.l.b16 %v602
        %v687 = vunpack.c.l.b16 %v603
        %v688 = vunpack.c.l.b16 %v604
        %v689 = vunpack.c.l.b16 %v605
        %v690 = vunpack.c.l.b16 %v606
        %v691 = vunpack.c.l.b16 %v607
        %v692 = vunpack.c.l.b16 %v608
        %v693 = vpack.c.b16 %v678, %v677
        %v694 = vpack.c.b16 %v680, %v679
        %v695 = vpack.c.b16 %v682, %v681
        %v696 = vpack.c.b16 %v684, %v683
        %v697 = vpack.c.b16 %v686, %v685
        %v698 = vpack.c.b16 %v688, %v687
        %v699 = vpack.c.b16 %v690, %v689
        %v700 = vpack.c.b16 %v692, %v691
        %709 = vmatpush.bf16.msra.mxu0 %v700
        %710 = vmatpush.bf16.msra.mxu0 %v699
        %711 = vmatpush.bf16.msra.mxu0 %v698
        %712 = vmatpush.bf16.msra.mxu0 %v697
        %713 = vmatpush.bf16.msra.mxu0 %v696
        %714 = vmatpush.bf16.msra.mxu0 %v695
        %715 = vmatpush.bf16.msra.mxu0 %v694
        %716 = vmatpush.bf16.msra.mxu0 %v693
        %717 = vmatmul.bf16.gmra.mxu0 %v645
        %v718 = vpop.f32.mrf.mxu0
        %v719 = vadd.f32 %v611, %v718
        %v720 = vpop.f32.mrf.mxu0
        %v721 = vadd.f32 %v611, %v720
        %722 = vmatmul.bf16.gmra.mxu0 %v646
        %v723 = vpop.f32.mrf.mxu0
        %v724 = vadd.f32 %v611, %v723
        %v725 = vpop.f32.mrf.mxu0
        %v726 = vadd.f32 %v611, %v725
        %727 = vmatmul.bf16.gmra.mxu0 %v647
        %v728 = vpop.f32.mrf.mxu0
        %v729 = vadd.f32 %v611, %v728
        %v730 = vpop.f32.mrf.mxu0
        %v731 = vadd.f32 %v611, %v730
        %732 = vmatmul.bf16.gmra.mxu0 %v648
        %v733 = vpop.f32.mrf.mxu0
        %v734 = vadd.f32 %v611, %v733
        %v735 = vpop.f32.mrf.mxu0
        %v736 = vadd.f32 %v611, %v735
        %737 = vmatmul.bf16.gmra.mxu0 %v649
        %v738 = vpop.f32.mrf.mxu0
        %v739 = vadd.f32 %v611, %v738
        %v740 = vpop.f32.mrf.mxu0
        %v741 = vadd.f32 %v611, %v740
        %742 = vmatmul.bf16.gmra.mxu0 %v650
        %v743 = vpop.f32.mrf.mxu0
        %v744 = vadd.f32 %v611, %v743
        %v745 = vpop.f32.mrf.mxu0
        %v746 = vadd.f32 %v611, %v745
        %747 = vmatmul.bf16.gmra.mxu0 %v651
        %v748 = vpop.f32.mrf.mxu0
        %v749 = vadd.f32 %v611, %v748
        %v750 = vpop.f32.mrf.mxu0
        %v751 = vadd.f32 %v611, %v750
        %752 = vmatmul.bf16.gmra.mxu0 %v652
        %v753 = vpop.f32.mrf.mxu0
        %v754 = vadd.f32 %v611, %v753
        %v755 = vpop.f32.mrf.mxu0
        %v756 = vadd.f32 %v611, %v755
        %757 = vdwg.mxu0
        %v758 = vmax.f32 %v719, 0.0
        %v759 = vmax.f32 %v721, 0.0
        %v760 = vmax.f32 %v724, 0.0
        %v761 = vmax.f32 %v726, 0.0
        %v762 = vmax.f32 %v729, 0.0
        %v763 = vmax.f32 %v731, 0.0
        %v764 = vmax.f32 %v734, 0.0
        %v765 = vmax.f32 %v736, 0.0
        %v766 = vmax.f32 %v739, 0.0
        %v767 = vmax.f32 %v741, 0.0
        %v768 = vmax.f32 %v744, 0.0
        %v769 = vmax.f32 %v746, 0.0
        %v770 = vmax.f32 %v749, 0.0
        %v771 = vmax.f32 %v751, 0.0
        %v772 = vmax.f32 %v754, 0.0
        %v773 = vmax.f32 %v756, 0.0
        %v774 = vpack.c.bf16 %v759, %v758
        %v775 = vpack.c.bf16 %v761, %v760
        %v776 = vpack.c.bf16 %v763, %v762
        %v777 = vpack.c.bf16 %v765, %v764
        %v778 = vpack.c.bf16 %v767, %v766
        %v779 = vpack.c.bf16 %v769, %v768
        %v780 = vpack.c.bf16 %v771, %v770
        %v781 = vpack.c.bf16 %v773, %v772
        %v782 = vld [vmem:[#allocation7] sm:$0xf]
        %v783 = vld [vmem:[#allocation7 + $0x4] sm:$0xf]
        %v784 = vld [vmem:[#allocation7 + $0x8] sm:$0xf]
        %v785 = vld [vmem:[#allocation7 + $0xc] sm:$0xf]
        %v786 = vld [vmem:[#allocation7 + $0x10] sm:$0xf]
        %v787 = vld [vmem:[#allocation7 + $0x14] sm:$0xf]
        %v788 = vld [vmem:[#allocation7 + $0x18] sm:$0xf]
        %v789 = vld [vmem:[#allocation7 + $0x1c] sm:$0xf]
        %v790 = vld [vmem:[#allocation7 + $0x20] sm:$0xf]
        %v791 = vld [vmem:[#allocation7 + $0x24] sm:$0xf]
        %v792 = vld [vmem:[#allocation7 + $0x28] sm:$0xf]
        %v793 = vld [vmem:[#allocation7 + $0x2c] sm:$0xf]
        %v794 = vld [vmem:[#allocation7 + $0x30] sm:$0xf]
        %v795 = vld [vmem:[#allocation7 + $0x34] sm:$0xf]
        %v796 = vld [vmem:[#allocation7 + $0x38] sm:$0xf]
        %v797 = vld [vmem:[#allocation7 + $0x3c] sm:$0xf]
        %v798 = vld [vmem:[#allocation8] sm:$0x1]
        %v800 = vperm.slane %v798, 0
        %v818 = vunpack.c.l.b16 %v782
        %v819 = vunpack.c.l.b16 %v783
        %v820 = vunpack.c.l.b16 %v784
        %v821 = vunpack.c.l.b16 %v785
        %v822 = vunpack.c.l.b16 %v786
        %v823 = vunpack.c.l.b16 %v787
        %v824 = vunpack.c.l.b16 %v788
        %v825 = vunpack.c.l.b16 %v789
        %v826 = vunpack.c.l.b16 %v790
        %v827 = vunpack.c.l.b16 %v791
        %v828 = vunpack.c.l.b16 %v792
        %v829 = vunpack.c.l.b16 %v793
        %v830 = vunpack.c.l.b16 %v794
        %v831 = vunpack.c.l.b16 %v795
        %v832 = vunpack.c.l.b16 %v796
        %v833 = vunpack.c.l.b16 %v797
        %v834 = vpack.c.b16 %v819, %v818
        %v835 = vpack.c.b16 %v821, %v820
        %v836 = vpack.c.b16 %v823, %v822
        %v837 = vpack.c.b16 %v825, %v824
        %v838 = vpack.c.b16 %v827, %v826
        %v839 = vpack.c.b16 %v829, %v828
        %v840 = vpack.c.b16 %v831, %v830
        %v841 = vpack.c.b16 %v833, %v832
        %850 = vmatpush.bf16.msra.mxu0 %v841
        %851 = vmatpush.bf16.msra.mxu0 %v840
        %852 = vmatpush.bf16.msra.mxu0 %v839
        %853 = vmatpush.bf16.msra.mxu0 %v838
        %854 = vmatpush.bf16.msra.mxu0 %v837
        %855 = vmatpush.bf16.msra.mxu0 %v836
        %856 = vmatpush.bf16.msra.mxu0 %v835
        %857 = vmatpush.bf16.msra.mxu0 %v834
        %858 = vmatmul.bf16.gmra.mxu0 %v774
        %v859 = vpop.f32.mrf.mxu0
        %v860 = vadd.f32 %v800, %v859
        %v861 = vpop.f32.mrf.mxu0
        %v862 = vadd.f32 %v800, %v861
        %863 = vmatmul.bf16.gmra.mxu0 %v775
        %v864 = vpop.f32.mrf.mxu0
        %v865 = vadd.f32 %v800, %v864
        %v866 = vpop.f32.mrf.mxu0
        %v867 = vadd.f32 %v800, %v866
        %868 = vmatmul.bf16.gmra.mxu0 %v776
        %v869 = vpop.f32.mrf.mxu0
        %v870 = vadd.f32 %v800, %v869
        %v871 = vpop.f32.mrf.mxu0
        %v872 = vadd.f32 %v800, %v871
        %873 = vmatmul.bf16.gmra.mxu0 %v777
        %v874 = vpop.f32.mrf.mxu0
        %v875 = vadd.f32 %v800, %v874
        %v876 = vpop.f32.mrf.mxu0
        %v877 = vadd.f32 %v800, %v876
        %878 = vmatmul.bf16.gmra.mxu0 %v778
        %v879 = vpop.f32.mrf.mxu0
        %v880 = vadd.f32 %v800, %v879
        %v881 = vpop.f32.mrf.mxu0
        %v882 = vadd.f32 %v800, %v881
        %883 = vmatmul.bf16.gmra.mxu0 %v779
        %v884 = vpop.f32.mrf.mxu0
        %v885 = vadd.f32 %v800, %v884
        %v886 = vpop.f32.mrf.mxu0
        %v887 = vadd.f32 %v800, %v886
        %888 = vmatmul.bf16.gmra.mxu0 %v780
        %v889 = vpop.f32.mrf.mxu0
        %v890 = vadd.f32 %v800, %v889
        %v891 = vpop.f32.mrf.mxu0
        %v892 = vadd.f32 %v800, %v891
        %893 = vmatmul.bf16.gmra.mxu0 %v781
        %v894 = vpop.f32.mrf.mxu0
        %v895 = vadd.f32 %v800, %v894
        %v896 = vpop.f32.mrf.mxu0
        %v897 = vadd.f32 %v800, %v896
        %898 = vdwg.mxu0
        %v899 = vmax.f32 %v860, 0.0
        %v900 = vmax.f32 %v862, 0.0
        %v901 = vmax.f32 %v865, 0.0
        %v902 = vmax.f32 %v867, 0.0
        %v903 = vmax.f32 %v870, 0.0
        %v904 = vmax.f32 %v872, 0.0
        %v905 = vmax.f32 %v875, 0.0
        %v906 = vmax.f32 %v877, 0.0
        %v907 = vmax.f32 %v880, 0.0
        %v908 = vmax.f32 %v882, 0.0
        %v909 = vmax.f32 %v885, 0.0
        %v910 = vmax.f32 %v887, 0.0
        %v911 = vmax.f32 %v890, 0.0
        %v912 = vmax.f32 %v892, 0.0
        %v913 = vmax.f32 %v895, 0.0
        %v914 = vmax.f32 %v897, 0.0
        %v915 = vpack.c.bf16 %v900, %v899
        %v916 = vpack.c.bf16 %v902, %v901
        %v917 = vpack.c.bf16 %v904, %v903
        %v918 = vpack.c.bf16 %v906, %v905
        %v919 = vpack.c.bf16 %v908, %v907
        %v920 = vpack.c.bf16 %v910, %v909
        %v921 = vpack.c.bf16 %v912, %v911
        %v922 = vpack.c.bf16 %v914, %v913
        %v923 = vld [vmem:[#allocation10] sm:$0xff]
        %v924 = vld [vmem:[#allocation10 + $0x8] sm:$0xff]
        %v925 = vld [vmem:[#allocation10 + $0x10] sm:$0xff]
        %v926 = vld [vmem:[#allocation10 + $0x18] sm:$0xff]
        %v927 = vld [vmem:[#allocation10 + $0x20] sm:$0xff]
        %v928 = vld [vmem:[#allocation10 + $0x28] sm:$0xff]
        %v929 = vld [vmem:[#allocation10 + $0x30] sm:$0xff]
        %v930 = vld [vmem:[#allocation10 + $0x38] sm:$0xff]
        %v931 = vld [vmem:[#allocation10 + $0x40] sm:$0xff]
        %v932 = vld [vmem:[#allocation10 + $0x48] sm:$0xff]
        %v933 = vld [vmem:[#allocation10 + $0x50] sm:$0xff]
        %v934 = vld [vmem:[#allocation10 + $0x58] sm:$0xff]
        %v935 = vld [vmem:[#allocation10 + $0x60] sm:$0xff]
        %v936 = vld [vmem:[#allocation10 + $0x68] sm:$0xff]
        %v937 = vld [vmem:[#allocation10 + $0x70] sm:$0xff]
        %v938 = vld [vmem:[#allocation10 + $0x78] sm:$0xff]
        %v939 = vld [vmem:[%s6] sm:$0x3]
        %v941 = vperm.slane %v939, 0
        %v942 = vperm.slane %v939, 1
        %v961 = vunpack.c.l.b16 %v923
        %v962 = vunpack.c.h.b16 %v923
        %v963 = vunpack.c.l.b16 %v924
        %v964 = vunpack.c.h.b16 %v924
        %v965 = vunpack.c.l.b16 %v925
        %v966 = vunpack.c.h.b16 %v925
        %v967 = vunpack.c.l.b16 %v926
        %v968 = vunpack.c.h.b16 %v926
        %v969 = vunpack.c.l.b16 %v927
        %v970 = vunpack.c.h.b16 %v927
        %v971 = vunpack.c.l.b16 %v928
        %v972 = vunpack.c.h.b16 %v928
        %v973 = vunpack.c.l.b16 %v929
        %v974 = vunpack.c.h.b16 %v929
        %v975 = vunpack.c.l.b16 %v930
        %v976 = vunpack.c.h.b16 %v930
        %v977 = vunpack.c.l.b16 %v931
        %v978 = vunpack.c.h.b16 %v931
        %v979 = vunpack.c.l.b16 %v932
        %v980 = vunpack.c.h.b16 %v932
        %v981 = vunpack.c.l.b16 %v933
        %v982 = vunpack.c.h.b16 %v933
        %v983 = vunpack.c.l.b16 %v934
        %v984 = vunpack.c.h.b16 %v934
        %v985 = vunpack.c.l.b16 %v935
        %v986 = vunpack.c.h.b16 %v935
        %v987 = vunpack.c.l.b16 %v936
        %v988 = vunpack.c.h.b16 %v936
        %v989 = vunpack.c.l.b16 %v937
        %v990 = vunpack.c.h.b16 %v937
        %v991 = vunpack.c.l.b16 %v938
        %v992 = vunpack.c.h.b16 %v938
        %v993 = vpack.c.b16 %v963, %v961
        %v994 = vpack.c.b16 %v964, %v962
        %v995 = vpack.c.b16 %v967, %v965
        %v996 = vpack.c.b16 %v968, %v966
        %v997 = vpack.c.b16 %v971, %v969
        %v998 = vpack.c.b16 %v972, %v970
        %v999 = vpack.c.b16 %v975, %v973
        %v1000 = vpack.c.b16 %v976, %v974
        %v1001 = vpack.c.b16 %v979, %v977
        %v1002 = vpack.c.b16 %v980, %v978
        %v1003 = vpack.c.b16 %v983, %v981
        %v1004 = vpack.c.b16 %v984, %v982
        %v1005 = vpack.c.b16 %v987, %v985
        %v1006 = vpack.c.b16 %v988, %v986
        %v1007 = vpack.c.b16 %v991, %v989
        %v1008 = vpack.c.b16 %v992, %v990
        %1025 = vmatpush.bf16.msra.mxu0 %v1007
        %1026 = vmatpush.bf16.msra.mxu0 %v1005
        %1027 = vmatpush.bf16.msra.mxu0 %v1003
        %1028 = vmatpush.bf16.msra.mxu0 %v1001
        %1029 = vmatpush.bf16.msra.mxu0 %v999
        %1030 = vmatpush.bf16.msra.mxu0 %v997
        %1031 = vmatpush.bf16.msra.mxu0 %v995
        %1032 = vmatpush.bf16.msra.mxu0 %v993
        %1033 = vmatmul.bf16.gmra.mxu0 %v915
        %v1034 = vpop.f32.mrf.mxu0
        %v1035 = vadd.f32 %v941, %v1034
        %v1036 = vpop.f32.mrf.mxu0
        %v1037 = vadd.f32 %v941, %v1036
        %1038 = vmatmul.bf16.gmra.mxu0 %v916
        %v1039 = vpop.f32.mrf.mxu0
        %v1040 = vadd.f32 %v941, %v1039
        %v1041 = vpop.f32.mrf.mxu0
        %v1042 = vadd.f32 %v941, %v1041
        %1043 = vmatmul.bf16.gmra.mxu0 %v917
        %v1044 = vpop.f32.mrf.mxu0
        %v1045 = vadd.f32 %v941, %v1044
        %v1046 = vpop.f32.mrf.mxu0
        %v1047 = vadd.f32 %v941, %v1046
        %1048 = vmatmul.bf16.gmra.mxu0 %v918
        %v1049 = vpop.f32.mrf.mxu0
        %v1050 = vadd.f32 %v941, %v1049
        %v1051 = vpop.f32.mrf.mxu0
        %v1052 = vadd.f32 %v941, %v1051
        %1053 = vmatmul.bf16.gmra.mxu0 %v919
        %v1054 = vpop.f32.mrf.mxu0
        %v1055 = vadd.f32 %v941, %v1054
        %v1056 = vpop.f32.mrf.mxu0
        %v1057 = vadd.f32 %v941, %v1056
        %1058 = vmatmul.bf16.gmra.mxu0 %v920
        %v1059 = vpop.f32.mrf.mxu0
        %v1060 = vadd.f32 %v941, %v1059
        %v1061 = vpop.f32.mrf.mxu0
        %v1062 = vadd.f32 %v941, %v1061
        %1063 = vmatmul.bf16.gmra.mxu0 %v921
        %v1064 = vpop.f32.mrf.mxu0
        %v1065 = vadd.f32 %v941, %v1064
        %v1066 = vpop.f32.mrf.mxu0
        %v1067 = vadd.f32 %v941, %v1066
        %1068 = vmatmul.bf16.gmra.mxu0 %v922
        %v1069 = vpop.f32.mrf.mxu0
        %v1070 = vadd.f32 %v941, %v1069
        %v1071 = vpop.f32.mrf.mxu0
        %v1072 = vadd.f32 %v941, %v1071
        %1073 = vdwg.mxu0
        %1074 = vmatpush.bf16.msra.mxu0 %v1008
        %1075 = vmatpush.bf16.msra.mxu0 %v1006
        %1076 = vmatpush.bf16.msra.mxu0 %v1004
        %1077 = vmatpush.bf16.msra.mxu0 %v1002
        %1078 = vmatpush.bf16.msra.mxu0 %v1000
        %1079 = vmatpush.bf16.msra.mxu0 %v998
        %1080 = vmatpush.bf16.msra.mxu0 %v996
        %1081 = vmatpush.bf16.msra.mxu0 %v994
        %1082 = vmatmul.bf16.gmra.mxu0 %v915
        %v1083 = vpop.f32.mrf.mxu0
        %v1084 = vadd.f32 %v942, %v1083
        %v1085 = vpop.f32.mrf.mxu0
        %v1086 = vadd.f32 %v942, %v1085
        %1087 = vmatmul.bf16.gmra.mxu0 %v916
        %v1088 = vpop.f32.mrf.mxu0
        %v1089 = vadd.f32 %v942, %v1088
        %v1090 = vpop.f32.mrf.mxu0
        %v1091 = vadd.f32 %v942, %v1090
        %1092 = vmatmul.bf16.gmra.mxu0 %v917
        %v1093 = vpop.f32.mrf.mxu0
        %v1094 = vadd.f32 %v942, %v1093
        %v1095 = vpop.f32.mrf.mxu0
        %v1096 = vadd.f32 %v942, %v1095
        %1097 = vmatmul.bf16.gmra.mxu0 %v918
        %v1098 = vpop.f32.mrf.mxu0
        %v1099 = vadd.f32 %v942, %v1098
        %v1100 = vpop.f32.mrf.mxu0
        %v1101 = vadd.f32 %v942, %v1100
        %1102 = vmatmul.bf16.gmra.mxu0 %v919
        %v1103 = vpop.f32.mrf.mxu0
        %v1104 = vadd.f32 %v942, %v1103
        %v1105 = vpop.f32.mrf.mxu0
        %v1106 = vadd.f32 %v942, %v1105
        %1107 = vmatmul.bf16.gmra.mxu0 %v920
        %v1108 = vpop.f32.mrf.mxu0
        %v1109 = vadd.f32 %v942, %v1108
        %v1110 = vpop.f32.mrf.mxu0
        %v1111 = vadd.f32 %v942, %v1110
        %1112 = vmatmul.bf16.gmra.mxu0 %v921
        %v1113 = vpop.f32.mrf.mxu0
        %v1114 = vadd.f32 %v942, %v1113
        %v1115 = vpop.f32.mrf.mxu0
        %v1116 = vadd.f32 %v942, %v1115
        %1117 = vmatmul.bf16.gmra.mxu0 %v922
        %v1118 = vpop.f32.mrf.mxu0
        %v1119 = vadd.f32 %v942, %v1118
        %v1120 = vpop.f32.mrf.mxu0
        %v1121 = vadd.f32 %v942, %v1120
        %1122 = vdwg.mxu0
        %v1123 = vmax.f32 %v1035, 0.0
        %v1124 = vmax.f32 %v1084, 0.0
        %v1125 = vmax.f32 %v1037, 0.0
        %v1126 = vmax.f32 %v1086, 0.0
        %v1127 = vmax.f32 %v1040, 0.0
        %v1128 = vmax.f32 %v1089, 0.0
        %v1129 = vmax.f32 %v1042, 0.0
        %v1130 = vmax.f32 %v1091, 0.0
        %v1131 = vmax.f32 %v1045, 0.0
        %v1132 = vmax.f32 %v1094, 0.0
        %v1133 = vmax.f32 %v1047, 0.0
        %v1134 = vmax.f32 %v1096, 0.0
        %v1135 = vmax.f32 %v1050, 0.0
        %v1136 = vmax.f32 %v1099, 0.0
        %v1137 = vmax.f32 %v1052, 0.0
        %v1138 = vmax.f32 %v1101, 0.0
        %v1139 = vmax.f32 %v1055, 0.0
        %v1140 = vmax.f32 %v1104, 0.0
        %v1141 = vmax.f32 %v1057, 0.0
        %v1142 = vmax.f32 %v1106, 0.0
        %v1143 = vmax.f32 %v1060, 0.0
        %v1144 = vmax.f32 %v1109, 0.0
        %v1145 = vmax.f32 %v1062, 0.0
        %v1146 = vmax.f32 %v1111, 0.0
        %v1147 = vmax.f32 %v1065, 0.0
        %v1148 = vmax.f32 %v1114, 0.0
        %v1149 = vmax.f32 %v1067, 0.0
        %v1150 = vmax.f32 %v1116, 0.0
        %v1151 = vmax.f32 %v1070, 0.0
        %v1152 = vmax.f32 %v1119, 0.0
        %v1153 = vmax.f32 %v1072, 0.0
        %v1154 = vmax.f32 %v1121, 0.0
        %v1155 = vpack.c.bf16 %v1125, %v1123
        %v1156 = vpack.c.bf16 %v1126, %v1124
        %v1157 = vpack.c.bf16 %v1129, %v1127
        %v1158 = vpack.c.bf16 %v1130, %v1128
        %v1159 = vpack.c.bf16 %v1133, %v1131
        %v1160 = vpack.c.bf16 %v1134, %v1132
        %v1161 = vpack.c.bf16 %v1137, %v1135
        %v1162 = vpack.c.bf16 %v1138, %v1136
        %v1163 = vpack.c.bf16 %v1141, %v1139
        %v1164 = vpack.c.bf16 %v1142, %v1140
        %v1165 = vpack.c.bf16 %v1145, %v1143
        %v1166 = vpack.c.bf16 %v1146, %v1144
        %v1167 = vpack.c.bf16 %v1149, %v1147
        %v1168 = vpack.c.bf16 %v1150, %v1148
        %v1169 = vpack.c.bf16 %v1153, %v1151
        %v1170 = vpack.c.bf16 %v1154, %v1152
        %v1171 = vld [vmem:[#allocation11] sm:$0xf]
        %v1172 = vld [vmem:[#allocation11 + $0x4] sm:$0xf]
        %v1173 = vld [vmem:[#allocation11 + $0x8] sm:$0xf]
        %v1174 = vld [vmem:[#allocation11 + $0xc] sm:$0xf]
        %v1175 = vld [vmem:[#allocation11 + $0x10] sm:$0xf]
        %v1176 = vld [vmem:[#allocation11 + $0x14] sm:$0xf]
        %v1177 = vld [vmem:[#allocation11 + $0x18] sm:$0xf]
        %v1178 = vld [vmem:[#allocation11 + $0x1c] sm:$0xf]
        %v1179 = vld [vmem:[#allocation11 + $0x20] sm:$0xf]
        %v1180 = vld [vmem:[#allocation11 + $0x24] sm:$0xf]
        %v1181 = vld [vmem:[#allocation11 + $0x28] sm:$0xf]
        %v1182 = vld [vmem:[#allocation11 + $0x2c] sm:$0xf]
        %v1183 = vld [vmem:[#allocation11 + $0x30] sm:$0xf]
        %v1184 = vld [vmem:[#allocation11 + $0x34] sm:$0xf]
        %v1185 = vld [vmem:[#allocation11 + $0x38] sm:$0xf]
        %v1186 = vld [vmem:[#allocation11 + $0x3c] sm:$0xf]
        %v1187 = vld [vmem:[#allocation11 + $0x40] sm:$0xf]
        %v1188 = vld [vmem:[#allocation11 + $0x44] sm:$0xf]
        %v1189 = vld [vmem:[#allocation11 + $0x48] sm:$0xf]
        %v1190 = vld [vmem:[#allocation11 + $0x4c] sm:$0xf]
        %v1191 = vld [vmem:[#allocation11 + $0x50] sm:$0xf]
        %v1192 = vld [vmem:[#allocation11 + $0x54] sm:$0xf]
        %v1193 = vld [vmem:[#allocation11 + $0x58] sm:$0xf]
        %v1194 = vld [vmem:[#allocation11 + $0x5c] sm:$0xf]
        %v1195 = vld [vmem:[#allocation11 + $0x60] sm:$0xf]
        %v1196 = vld [vmem:[#allocation11 + $0x64] sm:$0xf]
        %v1197 = vld [vmem:[#allocation11 + $0x68] sm:$0xf]
        %v1198 = vld [vmem:[#allocation11 + $0x6c] sm:$0xf]
        %v1199 = vld [vmem:[#allocation11 + $0x70] sm:$0xf]
        %v1200 = vld [vmem:[#allocation11 + $0x74] sm:$0xf]
        %v1201 = vld [vmem:[#allocation11 + $0x78] sm:$0xf]
        %v1202 = vld [vmem:[#allocation11 + $0x7c] sm:$0xf]
        %v1203 = vld [vmem:[%s8] sm:$0x1]
        %v1205 = vperm.slane %v1203, 0
        %v1239 = vunpack.c.l.b16 %v1171
        %v1240 = vunpack.c.l.b16 %v1172
        %v1241 = vunpack.c.l.b16 %v1173
        %v1242 = vunpack.c.l.b16 %v1174
        %v1243 = vunpack.c.l.b16 %v1175
        %v1244 = vunpack.c.l.b16 %v1176
        %v1245 = vunpack.c.l.b16 %v1177
        %v1246 = vunpack.c.l.b16 %v1178
        %v1247 = vunpack.c.l.b16 %v1179
        %v1248 = vunpack.c.l.b16 %v1180
        %v1249 = vunpack.c.l.b16 %v1181
        %v1250 = vunpack.c.l.b16 %v1182
        %v1251 = vunpack.c.l.b16 %v1183
        %v1252 = vunpack.c.l.b16 %v1184
        %v1253 = vunpack.c.l.b16 %v1185
        %v1254 = vunpack.c.l.b16 %v1186
        %v1255 = vunpack.c.l.b16 %v1187
        %v1256 = vunpack.c.l.b16 %v1188
        %v1257 = vunpack.c.l.b16 %v1189
        %v1258 = vunpack.c.l.b16 %v1190
        %v1259 = vunpack.c.l.b16 %v1191
        %v1260 = vunpack.c.l.b16 %v1192
        %v1261 = vunpack.c.l.b16 %v1193
        %v1262 = vunpack.c.l.b16 %v1194
        %v1263 = vunpack.c.l.b16 %v1195
        %v1264 = vunpack.c.l.b16 %v1196
        %v1265 = vunpack.c.l.b16 %v1197
        %v1266 = vunpack.c.l.b16 %v1198
        %v1267 = vunpack.c.l.b16 %v1199
        %v1268 = vunpack.c.l.b16 %v1200
        %v1269 = vunpack.c.l.b16 %v1201
        %v1270 = vunpack.c.l.b16 %v1202
        %v1271 = vpack.c.b16 %v1240, %v1239
        %v1272 = vpack.c.b16 %v1242, %v1241
        %v1273 = vpack.c.b16 %v1244, %v1243
        %v1274 = vpack.c.b16 %v1246, %v1245
        %v1275 = vpack.c.b16 %v1248, %v1247
        %v1276 = vpack.c.b16 %v1250, %v1249
        %v1277 = vpack.c.b16 %v1252, %v1251
        %v1278 = vpack.c.b16 %v1254, %v1253
        %v1279 = vpack.c.b16 %v1256, %v1255
        %v1280 = vpack.c.b16 %v1258, %v1257
        %v1281 = vpack.c.b16 %v1260, %v1259
        %v1282 = vpack.c.b16 %v1262, %v1261
        %v1283 = vpack.c.b16 %v1264, %v1263
        %v1284 = vpack.c.b16 %v1266, %v1265
        %v1285 = vpack.c.b16 %v1268, %v1267
        %v1286 = vpack.c.b16 %v1270, %v1269
        %1303 = vmatpush.bf16.msra.mxu0 %v1278
        %1304 = vmatpush.bf16.msra.mxu0 %v1277
        %1305 = vmatpush.bf16.msra.mxu0 %v1276
        %1306 = vmatpush.bf16.msra.mxu0 %v1275
        %1307 = vmatpush.bf16.msra.mxu0 %v1274
        %1308 = vmatpush.bf16.msra.mxu0 %v1273
        %1309 = vmatpush.bf16.msra.mxu0 %v1272
        %1310 = vmatpush.bf16.msra.mxu0 %v1271
        %1311 = vmatmul.bf16.gmra.mxu0 %v1155
        %v1312 = vpop.f32.mrf.mxu0
        %v1313 = vadd.f32 %v1205, %v1312
        %v1314 = vpop.f32.mrf.mxu0
        %v1315 = vadd.f32 %v1205, %v1314
        %1316 = vmatmul.bf16.gmra.mxu0 %v1157
        %v1317 = vpop.f32.mrf.mxu0
        %v1318 = vadd.f32 %v1205, %v1317
        %v1319 = vpop.f32.mrf.mxu0
        %v1320 = vadd.f32 %v1205, %v1319
        %1321 = vmatmul.bf16.gmra.mxu0 %v1159
        %v1322 = vpop.f32.mrf.mxu0
        %v1323 = vadd.f32 %v1205, %v1322
        %v1324 = vpop.f32.mrf.mxu0
        %v1325 = vadd.f32 %v1205, %v1324
        %1326 = vmatmul.bf16.gmra.mxu0 %v1161
        %v1327 = vpop.f32.mrf.mxu0
        %v1328 = vadd.f32 %v1205, %v1327
        %v1329 = vpop.f32.mrf.mxu0
        %v1330 = vadd.f32 %v1205, %v1329
        %1331 = vmatmul.bf16.gmra.mxu0 %v1163
        %v1332 = vpop.f32.mrf.mxu0
        %v1333 = vadd.f32 %v1205, %v1332
        %v1334 = vpop.f32.mrf.mxu0
        %v1335 = vadd.f32 %v1205, %v1334
        %1336 = vmatmul.bf16.gmra.mxu0 %v1165
        %v1337 = vpop.f32.mrf.mxu0
        %v1338 = vadd.f32 %v1205, %v1337
        %v1339 = vpop.f32.mrf.mxu0
        %v1340 = vadd.f32 %v1205, %v1339
        %1341 = vmatmul.bf16.gmra.mxu0 %v1167
        %v1342 = vpop.f32.mrf.mxu0
        %v1343 = vadd.f32 %v1205, %v1342
        %v1344 = vpop.f32.mrf.mxu0
        %v1345 = vadd.f32 %v1205, %v1344
        %1346 = vmatmul.bf16.gmra.mxu0 %v1169
        %v1347 = vpop.f32.mrf.mxu0
        %v1348 = vadd.f32 %v1205, %v1347
        %v1349 = vpop.f32.mrf.mxu0
        %v1350 = vadd.f32 %v1205, %v1349
        %1351 = vdwg.mxu0
        %1352 = vmatpush.bf16.msra.mxu0 %v1286
        %1353 = vmatpush.bf16.msra.mxu0 %v1285
        %1354 = vmatpush.bf16.msra.mxu0 %v1284
        %1355 = vmatpush.bf16.msra.mxu0 %v1283
        %1356 = vmatpush.bf16.msra.mxu0 %v1282
        %1357 = vmatpush.bf16.msra.mxu0 %v1281
        %1358 = vmatpush.bf16.msra.mxu0 %v1280
        %1359 = vmatpush.bf16.msra.mxu0 %v1279
        %1360 = vmatmul.bf16.gmra.mxu0 %v1156
        %v1361 = vpop.f32.mrf.mxu0
        %v1362 = vadd.f32 %v1313, %v1361
        %v1363 = vpop.f32.mrf.mxu0
        %v1364 = vadd.f32 %v1315, %v1363
        %1365 = vmatmul.bf16.gmra.mxu0 %v1158
        %v1366 = vpop.f32.mrf.mxu0
        %v1367 = vadd.f32 %v1318, %v1366
        %v1368 = vpop.f32.mrf.mxu0
        %v1369 = vadd.f32 %v1320, %v1368
        %1370 = vmatmul.bf16.gmra.mxu0 %v1160
        %v1371 = vpop.f32.mrf.mxu0
        %v1372 = vadd.f32 %v1323, %v1371
        %v1373 = vpop.f32.mrf.mxu0
        %v1374 = vadd.f32 %v1325, %v1373
        %1375 = vmatmul.bf16.gmra.mxu0 %v1162
        %v1376 = vpop.f32.mrf.mxu0
        %v1377 = vadd.f32 %v1328, %v1376
        %v1378 = vpop.f32.mrf.mxu0
        %v1379 = vadd.f32 %v1330, %v1378
        %1380 = vmatmul.bf16.gmra.mxu0 %v1164
        %v1381 = vpop.f32.mrf.mxu0
        %v1382 = vadd.f32 %v1333, %v1381
        %v1383 = vpop.f32.mrf.mxu0
        %v1384 = vadd.f32 %v1335, %v1383
        %1385 = vmatmul.bf16.gmra.mxu0 %v1166
        %v1386 = vpop.f32.mrf.mxu0
        %v1387 = vadd.f32 %v1338, %v1386
        %v1388 = vpop.f32.mrf.mxu0
        %v1389 = vadd.f32 %v1340, %v1388
        %1390 = vmatmul.bf16.gmra.mxu0 %v1168
        %v1391 = vpop.f32.mrf.mxu0
        %v1392 = vadd.f32 %v1343, %v1391
        %v1393 = vpop.f32.mrf.mxu0
        %v1394 = vadd.f32 %v1345, %v1393
        %1395 = vmatmul.bf16.gmra.mxu0 %v1170
        %v1396 = vpop.f32.mrf.mxu0
        %v1397 = vadd.f32 %v1348, %v1396
        %v1398 = vpop.f32.mrf.mxu0
        %v1399 = vadd.f32 %v1350, %v1398
        %1400 = vdwg.mxu0
        %v1401 = vmax.f32 %v1362, 0.0
        %v1402 = vmax.f32 %v1364, 0.0
        %v1403 = vmax.f32 %v1367, 0.0
        %v1404 = vmax.f32 %v1369, 0.0
        %v1405 = vmax.f32 %v1372, 0.0
        %v1406 = vmax.f32 %v1374, 0.0
        %v1407 = vmax.f32 %v1377, 0.0
        %v1408 = vmax.f32 %v1379, 0.0
        %v1409 = vmax.f32 %v1382, 0.0
        %v1410 = vmax.f32 %v1384, 0.0
        %v1411 = vmax.f32 %v1387, 0.0
        %v1412 = vmax.f32 %v1389, 0.0
        %v1413 = vmax.f32 %v1392, 0.0
        %v1414 = vmax.f32 %v1394, 0.0
        %v1415 = vmax.f32 %v1397, 0.0
        %v1416 = vmax.f32 %v1399, 0.0
        %v1417 = vpack.c.bf16 %v1402, %v1401
        %v1418 = vpack.c.bf16 %v1404, %v1403
        %v1419 = vpack.c.bf16 %v1406, %v1405
        %v1420 = vpack.c.bf16 %v1408, %v1407
        %v1421 = vpack.c.bf16 %v1410, %v1409
        %v1422 = vpack.c.bf16 %v1412, %v1411
        %v1423 = vpack.c.bf16 %v1414, %v1413
        %v1424 = vpack.c.bf16 %v1416, %v1415
        %v1425 = vld [vmem:[#allocation13] sm:$0xf]
        %v1426 = vld [vmem:[#allocation13 + $0x4] sm:$0xf]
        %v1427 = vld [vmem:[#allocation13 + $0x8] sm:$0xf]
        %v1428 = vld [vmem:[#allocation13 + $0xc] sm:$0xf]
        %v1429 = vld [vmem:[#allocation13 + $0x10] sm:$0xf]
        %v1430 = vld [vmem:[#allocation13 + $0x14] sm:$0xf]
        %v1431 = vld [vmem:[#allocation13 + $0x18] sm:$0xf]
        %v1432 = vld [vmem:[#allocation13 + $0x1c] sm:$0xf]
        %v1433 = vld [vmem:[#allocation13 + $0x20] sm:$0xf]
        %v1434 = vld [vmem:[#allocation13 + $0x24] sm:$0xf]
        %v1435 = vld [vmem:[#allocation13 + $0x28] sm:$0xf]
        %v1436 = vld [vmem:[#allocation13 + $0x2c] sm:$0xf]
        %v1437 = vld [vmem:[#allocation13 + $0x30] sm:$0xf]
        %v1438 = vld [vmem:[#allocation13 + $0x34] sm:$0xf]
        %v1439 = vld [vmem:[#allocation13 + $0x38] sm:$0xf]
        %v1440 = vld [vmem:[#allocation13 + $0x3c] sm:$0xf]
        %v1441 = vld [vmem:[%s10] sm:$0x1]
        %v1443 = vperm.slane %v1441, 0
        %v1461 = vunpack.c.l.b16 %v1425
        %v1462 = vunpack.c.l.b16 %v1426
        %v1463 = vunpack.c.l.b16 %v1427
        %v1464 = vunpack.c.l.b16 %v1428
        %v1465 = vunpack.c.l.b16 %v1429
        %v1466 = vunpack.c.l.b16 %v1430
        %v1467 = vunpack.c.l.b16 %v1431
        %v1468 = vunpack.c.l.b16 %v1432
        %v1469 = vunpack.c.l.b16 %v1433
        %v1470 = vunpack.c.l.b16 %v1434
        %v1471 = vunpack.c.l.b16 %v1435
        %v1472 = vunpack.c.l.b16 %v1436
        %v1473 = vunpack.c.l.b16 %v1437
        %v1474 = vunpack.c.l.b16 %v1438
        %v1475 = vunpack.c.l.b16 %v1439
        %v1476 = vunpack.c.l.b16 %v1440
        %v1477 = vpack.c.b16 %v1462, %v1461
        %v1478 = vpack.c.b16 %v1464, %v1463
        %v1479 = vpack.c.b16 %v1466, %v1465
        %v1480 = vpack.c.b16 %v1468, %v1467
        %v1481 = vpack.c.b16 %v1470, %v1469
        %v1482 = vpack.c.b16 %v1472, %v1471
        %v1483 = vpack.c.b16 %v1474, %v1473
        %v1484 = vpack.c.b16 %v1476, %v1475
        %1493 = vmatpush.bf16.msra.mxu0 %v1484
        %1494 = vmatpush.bf16.msra.mxu0 %v1483
        %1495 = vmatpush.bf16.msra.mxu0 %v1482
        %1496 = vmatpush.bf16.msra.mxu0 %v1481
        %1497 = vmatpush.bf16.msra.mxu0 %v1480
        %1498 = vmatpush.bf16.msra.mxu0 %v1479
        %1499 = vmatpush.bf16.msra.mxu0 %v1478
        %1500 = vmatpush.bf16.msra.mxu0 %v1477
        %1501 = vmatmul.bf16.gmra.mxu0 %v1417
        %v1502 = vpop.f32.mrf.mxu0
        %v1503 = vadd.f32 %v1443, %v1502
        %v1504 = vpop.f32.mrf.mxu0
        %v1505 = vadd.f32 %v1443, %v1504
        %1506 = vmatmul.bf16.gmra.mxu0 %v1418
        %v1507 = vpop.f32.mrf.mxu0
        %v1508 = vadd.f32 %v1443, %v1507
        %v1509 = vpop.f32.mrf.mxu0
        %v1510 = vadd.f32 %v1443, %v1509
        %1511 = vmatmul.bf16.gmra.mxu0 %v1419
        %v1512 = vpop.f32.mrf.mxu0
        %v1513 = vadd.f32 %v1443, %v1512
        %v1514 = vpop.f32.mrf.mxu0
        %v1515 = vadd.f32 %v1443, %v1514
        %1516 = vmatmul.bf16.gmra.mxu0 %v1420
        %v1517 = vpop.f32.mrf.mxu0
        %v1518 = vadd.f32 %v1443, %v1517
        %v1519 = vpop.f32.mrf.mxu0
        %v1520 = vadd.f32 %v1443, %v1519
        %1521 = vmatmul.bf16.gmra.mxu0 %v1421
        %v1522 = vpop.f32.mrf.mxu0
        %v1523 = vadd.f32 %v1443, %v1522
        %v1524 = vpop.f32.mrf.mxu0
        %v1525 = vadd.f32 %v1443, %v1524
        %1526 = vmatmul.bf16.gmra.mxu0 %v1422
        %v1527 = vpop.f32.mrf.mxu0
        %v1528 = vadd.f32 %v1443, %v1527
        %v1529 = vpop.f32.mrf.mxu0
        %v1530 = vadd.f32 %v1443, %v1529
        %1531 = vmatmul.bf16.gmra.mxu0 %v1423
        %v1532 = vpop.f32.mrf.mxu0
        %v1533 = vadd.f32 %v1443, %v1532
        %v1534 = vpop.f32.mrf.mxu0
        %v1535 = vadd.f32 %v1443, %v1534
        %1536 = vmatmul.bf16.gmra.mxu0 %v1424
        %v1537 = vpop.f32.mrf.mxu0
        %v1538 = vadd.f32 %v1443, %v1537
        %v1539 = vpop.f32.mrf.mxu0
        %v1540 = vadd.f32 %v1443, %v1539
        %1541 = vdwg.mxu0
        %v1542 = vmax.f32 %v1503, 0.0
        %v1543 = vmax.f32 %v1505, 0.0
        %v1544 = vmax.f32 %v1508, 0.0
        %v1545 = vmax.f32 %v1510, 0.0
        %v1546 = vmax.f32 %v1513, 0.0
        %v1547 = vmax.f32 %v1515, 0.0
        %v1548 = vmax.f32 %v1518, 0.0
        %v1549 = vmax.f32 %v1520, 0.0
        %v1550 = vmax.f32 %v1523, 0.0
        %v1551 = vmax.f32 %v1525, 0.0
        %v1552 = vmax.f32 %v1528, 0.0
        %v1553 = vmax.f32 %v1530, 0.0
        %v1554 = vmax.f32 %v1533, 0.0
        %v1555 = vmax.f32 %v1535, 0.0
        %v1556 = vmax.f32 %v1538, 0.0
        %v1557 = vmax.f32 %v1540, 0.0
        %v1558 = vpack.c.bf16 %v1543, %v1542
        %v1559 = vpack.c.bf16 %v1545, %v1544
        %v1560 = vpack.c.bf16 %v1547, %v1546
        %v1561 = vpack.c.bf16 %v1549, %v1548
        %v1562 = vpack.c.bf16 %v1551, %v1550
        %v1563 = vpack.c.bf16 %v1553, %v1552
        %v1564 = vpack.c.bf16 %v1555, %v1554
        %v1565 = vpack.c.bf16 %v1557, %v1556
        %v1566 = vld [vmem:[#allocation14] sm:$0xf]
        %v1567 = vld [vmem:[#allocation14 + $0x4] sm:$0xf]
        %v1568 = vld [vmem:[#allocation14 + $0x8] sm:$0xf]
        %v1569 = vld [vmem:[#allocation14 + $0xc] sm:$0xf]
        %v1570 = vld [vmem:[#allocation14 + $0x10] sm:$0xf]
        %v1571 = vld [vmem:[#allocation14 + $0x14] sm:$0xf]
        %v1572 = vld [vmem:[#allocation14 + $0x18] sm:$0xf]
        %v1573 = vld [vmem:[#allocation14 + $0x1c] sm:$0xf]
        %v1574 = vld [vmem:[#allocation14 + $0x20] sm:$0xf]
        %v1575 = vld [vmem:[#allocation14 + $0x24] sm:$0xf]
        %v1576 = vld [vmem:[#allocation14 + $0x28] sm:$0xf]
        %v1577 = vld [vmem:[#allocation14 + $0x2c] sm:$0xf]
        %v1578 = vld [vmem:[#allocation14 + $0x30] sm:$0xf]
        %v1579 = vld [vmem:[#allocation14 + $0x34] sm:$0xf]
        %v1580 = vld [vmem:[#allocation14 + $0x38] sm:$0xf]
        %v1581 = vld [vmem:[#allocation14 + $0x3c] sm:$0xf]
        %v1582 = vld [vmem:[%s12] sm:$0x1]
        %v1584 = vperm.slane %v1582, 0
        %v1602 = vunpack.c.l.b16 %v1566
        %v1603 = vunpack.c.l.b16 %v1567
        %v1604 = vunpack.c.l.b16 %v1568
        %v1605 = vunpack.c.l.b16 %v1569
        %v1606 = vunpack.c.l.b16 %v1570
        %v1607 = vunpack.c.l.b16 %v1571
        %v1608 = vunpack.c.l.b16 %v1572
        %v1609 = vunpack.c.l.b16 %v1573
        %v1610 = vunpack.c.l.b16 %v1574
        %v1611 = vunpack.c.l.b16 %v1575
        %v1612 = vunpack.c.l.b16 %v1576
        %v1613 = vunpack.c.l.b16 %v1577
        %v1614 = vunpack.c.l.b16 %v1578
        %v1615 = vunpack.c.l.b16 %v1579
        %v1616 = vunpack.c.l.b16 %v1580
        %v1617 = vunpack.c.l.b16 %v1581
        %v1618 = vpack.c.b16 %v1603, %v1602
        %v1619 = vpack.c.b16 %v1605, %v1604
        %v1620 = vpack.c.b16 %v1607, %v1606
        %v1621 = vpack.c.b16 %v1609, %v1608
        %v1622 = vpack.c.b16 %v1611, %v1610
        %v1623 = vpack.c.b16 %v1613, %v1612
        %v1624 = vpack.c.b16 %v1615, %v1614
        %v1625 = vpack.c.b16 %v1617, %v1616
        %1634 = vmatpush.bf16.msra.mxu0 %v1625
        %1635 = vmatpush.bf16.msra.mxu0 %v1624
        %1636 = vmatpush.bf16.msra.mxu0 %v1623
        %1637 = vmatpush.bf16.msra.mxu0 %v1622
        %1638 = vmatpush.bf16.msra.mxu0 %v1621
        %1639 = vmatpush.bf16.msra.mxu0 %v1620
        %1640 = vmatpush.bf16.msra.mxu0 %v1619
        %1641 = vmatpush.bf16.msra.mxu0 %v1618
        %1642 = vmatmul.bf16.gmra.mxu0 %v1558
        %v1643 = vpop.f32.mrf.mxu0
        %v1644 = vadd.f32 %v1584, %v1643
        %v1645 = vpop.f32.mrf.mxu0
        %v1646 = vadd.f32 %v1584, %v1645
        %1647 = vmatmul.bf16.gmra.mxu0 %v1559
        %v1648 = vpop.f32.mrf.mxu0
        %v1649 = vadd.f32 %v1584, %v1648
        %v1650 = vpop.f32.mrf.mxu0
        %v1651 = vadd.f32 %v1584, %v1650
        %1652 = vmatmul.bf16.gmra.mxu0 %v1560
        %v1653 = vpop.f32.mrf.mxu0
        %v1654 = vadd.f32 %v1584, %v1653
        %v1655 = vpop.f32.mrf.mxu0
        %v1656 = vadd.f32 %v1584, %v1655
        %1657 = vmatmul.bf16.gmra.mxu0 %v1561
        %v1658 = vpop.f32.mrf.mxu0
        %v1659 = vadd.f32 %v1584, %v1658
        %v1660 = vpop.f32.mrf.mxu0
        %v1661 = vadd.f32 %v1584, %v1660
        %1662 = vmatmul.bf16.gmra.mxu0 %v1562
        %v1663 = vpop.f32.mrf.mxu0
        %v1664 = vadd.f32 %v1584, %v1663
        %v1665 = vpop.f32.mrf.mxu0
        %v1666 = vadd.f32 %v1584, %v1665
        %1667 = vmatmul.bf16.gmra.mxu0 %v1563
        %v1668 = vpop.f32.mrf.mxu0
        %v1669 = vadd.f32 %v1584, %v1668
        %v1670 = vpop.f32.mrf.mxu0
        %v1671 = vadd.f32 %v1584, %v1670
        %1672 = vmatmul.bf16.gmra.mxu0 %v1564
        %v1673 = vpop.f32.mrf.mxu0
        %v1674 = vadd.f32 %v1584, %v1673
        %v1675 = vpop.f32.mrf.mxu0
        %v1676 = vadd.f32 %v1584, %v1675
        %1677 = vmatmul.bf16.gmra.mxu0 %v1565
        %v1678 = vpop.f32.mrf.mxu0
        %v1679 = vadd.f32 %v1584, %v1678
        %v1680 = vpop.f32.mrf.mxu0
        %v1681 = vadd.f32 %v1584, %v1680
        %1682 = vdwg.mxu0
        %1683 = vst [vmem:[%s574] sm:$0xff] %v1644
        %1684 = vst [vmem:[%s574 + $0x8] sm:$0xff] %v1646
        %1685 = vst [vmem:[%s574 + $0x10] sm:$0xff] %v1649
        %1686 = vst [vmem:[%s574 + $0x18] sm:$0xff] %v1651
        %1687 = vst [vmem:[%s574 + $0x20] sm:$0xff] %v1654
        %1688 = vst [vmem:[%s574 + $0x28] sm:$0xff] %v1656
        %1689 = vst [vmem:[%s574 + $0x30] sm:$0xff] %v1659
        %1690 = vst [vmem:[%s574 + $0x38] sm:$0xff] %v1661
        %1691 = vst [vmem:[%s574 + $0x40] sm:$0xff] %v1664
        %1692 = vst [vmem:[%s574 + $0x48] sm:$0xff] %v1666
        %1693 = vst [vmem:[%s574 + $0x50] sm:$0xff] %v1669
        %1694 = vst [vmem:[%s574 + $0x58] sm:$0xff] %v1671
        %1695 = vst [vmem:[%s574 + $0x60] sm:$0xff] %v1674
        %1696 = vst [vmem:[%s574 + $0x68] sm:$0xff] %v1676
        %1697 = vst [vmem:[%s574 + $0x70] sm:$0xff] %v1679
        %1698 = vst [vmem:[%s574 + $0x78] sm:$0xff] %v1681
        %s1699 = sand.u32 %s320, 1
        %s1700 = scalar_lea.sflag [#allocation4], %s1699
        %s1701 = sand.u32 %s320, 1
        %s1702 = smul.addr %s1701, 128
        %s1703 = scalar_lea.vmem [#allocation16], %s1702
        // Predicated region
        $region105: #{tpu_custom_call.1} parent=71 // pred_check
          %p1704 = pneg %p330
        $region106: #{tpu_custom_call.1} parent=71 // pred_check_branch
          %1706 = sbr.rel (%p1704) target = $region108
        $region107: #{tpu_custom_call.1} parent=71 // pred_region
          %s1707 = smul.u32 16, %s34
          %1709 = vsyncadd %s1700, 0
          %s1710 = smul.addr %s1707, 8
          %s1711 = scalar_lea.hbm %s13, %s1710
          %s1712 = sshll.u32 %s1703, 4
          %s1713 = int_to_ptr.vmem [resolvable:$true] %s1712
          %s1714 = sshll.u32 %s1711, 4
          %s1715 = int_to_ptr.hbm [resolvable:$true] %s1714
          %1720 = dma.vmem_to_hbm [thread:$0]  %s1713, 2048, %s1715, %s1700, 128, 128, 8
        $region108: #{tpu_custom_call.1} parent=71 // pred_fallthru
          _
      $region72: #{tpu_custom_call.1} parent=5 // pred_fallthru
        _
      %p1721 = scmp.le.s32.totalorder 2, %s29
      // Predicated region
      $region109: #{tpu_custom_call.1} parent=5 // pred_check
        %p1722 = pneg %p1721
      $region110: #{tpu_custom_call.1} parent=5 // pred_check_branch
        %1724 = sbr.rel (%p1722) target = $region112
      $region111: #{tpu_custom_call.1} parent=5 // pred_region
        %s1725 = ssub.s32 %s29, 2
        // Predicated region
        $region113: #{tpu_custom_call.1} parent=111 // pred_check
          %p1726 = pneg %p336
        $region114: #{tpu_custom_call.1} parent=111 // pred_check_branch
          %1728 = sbr.rel (%p1726) target = $region116
        $region115: #{tpu_custom_call.1} parent=111 // pred_region
          %s1729 = sand.u32 %s321, 1
          %s1730 = scalar_lea.sflag [#allocation4], %s1729
          %s1731 = sand.u32 %s321, 1
          %s1732 = smul.addr %s1731, 128
          %s1733 = scalar_lea.vmem [#allocation16], %s1732
          %1735 = dma.done %s1730, 2048
        $region116: #{tpu_custom_call.1} parent=111 // pred_fallthru
          _
      $region112: #{tpu_custom_call.1} parent=5 // pred_fallthru
        _
    $region6: #{tpu_custom_call.1} parent=1 // loop_footer
      %s33 = sadd.s32 1, %s29
    $region7: #{tpu_custom_call.1} parent=1 // loop_footer_branch
      %28 = sbr.rel target = $region3
    $region8: #{tpu_custom_call.1} parent=1 // loop_exit
      _
    %1736 = vsyncpa [#allocation3], 1
    %s1737 = scalar_lea.sflag [#allocation3], 1
    %1738 = vsyncpa %s1737, 1
    %1739 = vsyncpa [#allocation6], 1
    %1740 = vsyncpa [#allocation9], 1
    %1741 = vsyncpa [#allocation12], 1
    %1742 = vsyncpa [#allocation15], 1
    %1743 = vsyncpa [#allocation4], 1
    %s1744 = scalar_lea.sflag [#allocation4], 1
    %1745 = vsyncpa %s1744, 1

</llo_original>
